<compile_context>
chip_gen: v7x
topology: tpu7x:2x2x1
jax: 0.10.0
libtpu: 0.0.40
codegen_flags: <defaults>
</compile_context>

<pallas_src>
import math
import functools

import jax
import jax.numpy as jnp
from jax.experimental import pallas as pl
from jax.experimental.pallas import tpu as pltpu

# ---------------------------------------------------------------------------
# Config (consistent with DeiTConfig semantics: hidden % heads == 0)
# ---------------------------------------------------------------------------
BATCH = 2
SEQ = 8            # number of tokens ("patch_size" in the module)
HIDDEN = 32        # config.hidden_size
NUM_HEADS = 4      # config.num_attention_heads
HEAD_DIM = HIDDEN // NUM_HEADS   # attention_head_size
QKV_BIAS = True    # config.qkv_bias (DeiT default)
# attention_probs_dropout_prob = 0.0 / eval mode -> dropout is identity
# head_mask = None -> no masking


# ---------------------------------------------------------------------------
# Pallas kernel: whole batch in one grid step.
# ---------------------------------------------------------------------------
def _attn_kernel(x_ref, wqkv_ref, bqkv_ref, o_ref,
                 *, batch, seq, hidden, num_heads, head_dim):
    # x_ref: (B*S, D). Single fused projection on the MXU:
    #   qkv = x @ [Wq | Wk | Wv] + [bq | bk | bv]     -> (B*S, 3D)
    x = x_ref[...]
    qkv = jnp.dot(x, wqkv_ref[...],
                  preferred_element_type=jnp.float32) + bqkv_ref[...]

    # Split q/k/v and restore the batch axis (sublane-aligned reshape: 16 -> 2x8).
    q = qkv[:, 0 * hidden:1 * hidden].reshape(batch, seq, hidden)
    k = qkv[:, 1 * hidden:2 * hidden].reshape(batch, seq, hidden)
    v = qkv[:, 2 * hidden:3 * hidden].reshape(batch, seq, hidden)

    # Fold the 1/sqrt(hd) softmax scale into q once (one small vmul instead of
    # scaling every (B, S, S) score tile).
    q = q * (1.0 / math.sqrt(head_dim))

    # Static loop over heads; each head's matmuls are batched over B
    # (flash-attention-style einsums), so there is no per-batch grid step.
    ctx_heads = []
    for h in range(num_heads):
        lo = h * head_dim
        hi = lo + head_dim
        qh = q[:, :, lo:hi]                       # (B, S, hd)
        kh = k[:, :, lo:hi]                       # (B, S, hd)
        vh = v[:, :, lo:hi]                       # (B, S, hd)

        s = jnp.einsum('bqd,bkd->bqk', qh, kh,
                       preferred_element_type=jnp.float32)          # (B, S, S)
        s = s - jnp.max(s, axis=-1, keepdims=True)                   # stable softmax
        p = jnp.exp(s)
        p = p * pl.reciprocal(jnp.sum(p, axis=-1, keepdims=True), approx=True)
        # dropout (p=0.0, eval) and head_mask=None -> identity

        ctx_heads.append(jnp.einsum('bqk,bkd->bqd', p, vh,
                                    preferred_element_type=jnp.float32))  # (B, S, hd)

    # Re-merge heads and write with a single store.
    out = jnp.concatenate(ctx_heads, axis=-1)     # (B, S, D)
    o_ref[...] = out.astype(o_ref.dtype)


# ---------------------------------------------------------------------------
# Wrapper
# ---------------------------------------------------------------------------
def deit_self_attention(hidden_states, wq, bq, wk, bk, wv, bv):
    """hidden_states: (B, S, D) f32.  wq/wk/wv: (D, D) stored as (in, out).  b*: (D,)."""
    B, S, D = hidden_states.shape
    assert D == HIDDEN and D % NUM_HEADS == 0

    # Fuse the three projections (done once, outside the kernel, in plain JAX).
    wqkv = jnp.concatenate([wq, wk, wv], axis=1)                    # (D, 3D)
    bqkv = jnp.concatenate([bq, bk, bv], axis=0).reshape(1, 3 * D)  # (1, 3D)

    x2d = hidden_states.reshape(B * S, D)

    kernel = functools.partial(_attn_kernel, batch=B, seq=S, hidden=D,
                               num_heads=NUM_HEADS, head_dim=HEAD_DIM)

    ctx = pl.pallas_call(
        kernel,
        out_shape=jax.ShapeDtypeStruct((B, S, D), hidden_states.dtype),
        grid_spec=pltpu.PrefetchScalarGridSpec(
            num_scalar_prefetch=0,
            grid=(1,),  # single grid step: whole problem fits trivially in VMEM
            in_specs=[
                pl.BlockSpec((B * S, D), lambda i: (0, 0)),      # flattened activations
                pl.BlockSpec((D, 3 * D), lambda i: (0, 0)),      # fused Wqkv
                pl.BlockSpec((1, 3 * D), lambda i: (0, 0)),      # fused bqkv
            ],
            out_specs=pl.BlockSpec((B, S, D), lambda i: (0, 0, 0)),
        ),
        compiler_params=pltpu.CompilerParams(
            dimension_semantics=("arbitrary",)),
    )(x2d, wqkv, bqkv)

    # Exact-semantics note: with *_padding_out = None, the PyTorch module's final
    # `context_layer[:, :, self.v_padding_out != 0]` indexes with a scalar bool
    # (None != 0 -> True), which inserts a size-1 axis -> (B, S, 1, all_head_size).
    return ctx[:, :, None, :]


# ---------------------------------------------------------------------------
# Pure-JAX reference (for sanity check)
# ---------------------------------------------------------------------------
def _reference(x, wq, bq, wk, bk, wv, bv):
    B, S, D = x.shape
    q = x @ wq + bq
    k = x @ wk + bk
    v = x @ wv + bv

    def split(t):  # (B, S, D) -> (B, H, S, hd)
        return t.reshape(B, S, NUM_HEADS, HEAD_DIM).transpose(0, 2, 1, 3)

    q, k, v = split(q), split(k), split(v)
    scores = jnp.einsum("bhqd,bhkd->bhqk", q, k) / math.sqrt(HEAD_DIM)
    probs = jax.nn.softmax(scores, axis=-1)
    ctx = jnp.einsum("bhqk,bhkd->bhqd", probs, v)
    ctx = ctx.transpose(0, 2, 1, 3).reshape(B, S, D)
    return ctx[:, :, None, :]


if __name__ == "__main__":
    key = jax.random.PRNGKey(0)
    kx, k1, k2, k3, k4, k5, k6 = jax.random.split(key, 7)

    # Deterministic synthetic parameters (nn.Linear(hidden, hidden) x 3, with bias),
    # stored directly as (in, out) so the kernel does x @ W + b.
    x = jax.random.normal(kx, (BATCH, SEQ, HIDDEN), dtype=jnp.float32)
    wq = jax.random.normal(k1, (HIDDEN, HIDDEN), dtype=jnp.float32) * 0.02
    wk = jax.random.normal(k2, (HIDDEN, HIDDEN), dtype=jnp.float32) * 0.02
    wv = jax.random.normal(k3, (HIDDEN, HIDDEN), dtype=jnp.float32) * 0.02
    if QKV_BIAS:
        bq = jax.random.normal(k4, (HIDDEN,), dtype=jnp.float32) * 0.02
        bk = jax.random.normal(k5, (HIDDEN,), dtype=jnp.float32) * 0.02
        bv = jax.random.normal(k6, (HIDDEN,), dtype=jnp.float32) * 0.02
    else:
        bq = bk = bv = jnp.zeros((HIDDEN,), jnp.float32)

    out = deit_self_attention(x, wq, bq, wk, bk, wv, bv)
    out = jax.block_until_ready(out)

    ref = _reference(x, wq, bq, wk, bk, wv, bv)
    assert out.shape == (BATCH, SEQ, 1, HIDDEN), out.shape
    # Tolerance accounts for the approximate EUP reciprocal in the softmax denominator.
    err = float(jnp.max(jnp.abs(out - ref)))
    assert jnp.allclose(out, ref, atol=1e-3, rtol=1e-3), err

    print("KERNEL_OK")
</pallas_src>

<mosaic_0001>
module attributes {stable_mosaic.version = 11 : i64} {
  func.func @_attn_kernel(%arg0: i32, %arg1: memref<16x32xf32, #tpu.memory_space<vmem>>, %arg2: memref<32x96xf32, #tpu.memory_space<vmem>>, %arg3: memref<1x96xf32, #tpu.memory_space<vmem>>, %arg4: memref<2x8x32xf32, #tpu.memory_space<vmem>>) attributes {dimension_semantics = [#tpu.dimension_semantics<arbitrary>], iteration_bounds = array<i64: 1>, scalar_prefetch = 0 : i64, scratch_operands = 0 : i64, tpu.core_type = #tpu.core_type<tc>, window_params = [{pipeline_mode = #tpu.pipeline_mode<synchronous>, transform_indices = @transform_0, window_bounds = array<i64: 16, 32>}, {pipeline_mode = #tpu.pipeline_mode<synchronous>, transform_indices = @transform_1, window_bounds = array<i64: 32, 96>}, {pipeline_mode = #tpu.pipeline_mode<synchronous>, transform_indices = @transform_2, window_bounds = array<i64: 1, 96>}, {pipeline_mode = #tpu.pipeline_mode<synchronous>, transform_indices = @transform_3, window_bounds = array<i64: 2, 8, 32>}]} {
    %c0 = arith.constant 0 : index
    %c0_0 = arith.constant 0 : index
    %0 = vector.load %arg1[%c0, %c0_0] : memref<16x32xf32, #tpu.memory_space<vmem>>, vector<16x32xf32>
    %c0_1 = arith.constant 0 : index
    %c0_2 = arith.constant 0 : index
    %1 = vector.load %arg2[%c0_1, %c0_2] : memref<32x96xf32, #tpu.memory_space<vmem>>, vector<32x96xf32>
    %cst = arith.constant dense<0.000000e+00> : vector<16x96xf32>
    %2 = tpu.matmul %0, %1, %cst {dimension_numbers = #tpu.dot_dimension_numbers<[1], [0], [0], [1], [0, 0, 1, 1], [], []>} : vector<16x32xf32>, vector<32x96xf32>, vector<16x96xf32> -> vector<16x96xf32>
    %c0_3 = arith.constant 0 : index
    %c0_4 = arith.constant 0 : index
    %3 = vector.load %arg3[%c0_3, %c0_4] : memref<1x96xf32, #tpu.memory_space<vmem>>, vector<1x96xf32>
    %4 = vector.broadcast %3 : vector<1x96xf32> to vector<16x96xf32>
    %5 = arith.addf %2, %4 : vector<16x96xf32>
    %6 = vector.extract_strided_slice %5 {offsets = [0, 0], sizes = [16, 32], strides = [1, 1]} : vector<16x96xf32> to vector<16x32xf32>
    %7 = vector.shape_cast %6 : vector<16x32xf32> to vector<2x8x32xf32>
    %8 = vector.extract_strided_slice %5 {offsets = [0, 32], sizes = [16, 32], strides = [1, 1]} : vector<16x96xf32> to vector<16x32xf32>
    %9 = vector.shape_cast %8 : vector<16x32xf32> to vector<2x8x32xf32>
    %10 = vector.extract_strided_slice %5 {offsets = [0, 64], sizes = [16, 32], strides = [1, 1]} : vector<16x96xf32> to vector<16x32xf32>
    %11 = vector.shape_cast %10 : vector<16x32xf32> to vector<2x8x32xf32>
    %cst_5 = arith.constant 0.353553385 : f32
    %12 = vector.broadcast %cst_5 : f32 to vector<2x8x32xf32>
    %13 = arith.mulf %7, %12 : vector<2x8x32xf32>
    %14 = vector.extract_strided_slice %13 {offsets = [0, 0, 0], sizes = [2, 8, 8], strides = [1, 1, 1]} : vector<2x8x32xf32> to vector<2x8x8xf32>
    %15 = vector.extract_strided_slice %9 {offsets = [0, 0, 0], sizes = [2, 8, 8], strides = [1, 1, 1]} : vector<2x8x32xf32> to vector<2x8x8xf32>
    %16 = vector.extract_strided_slice %11 {offsets = [0, 0, 0], sizes = [2, 8, 8], strides = [1, 1, 1]} : vector<2x8x32xf32> to vector<2x8x8xf32>
    "tpu.trace_start"() <{level = 10 : i32, message = "bqd,bkd->bqk"}> : () -> ()
    %cst_6 = arith.constant dense<0.000000e+00> : vector<2x8x8xf32>
    %17 = tpu.matmul %14, %15, %cst_6 {dimension_numbers = #tpu.dot_dimension_numbers<[2], [2], [1], [1], [0, 0, 0, 1, 1, 1], [0], [0]>} : vector<2x8x8xf32>, vector<2x8x8xf32>, vector<2x8x8xf32> -> vector<2x8x8xf32>
    "tpu.trace_stop"() : () -> ()
    %cst_7 = arith.constant dense<0xFF800000> : vector<2x8xf32>
    %18 = vector.multi_reduction <maximumf>, %17, %cst_7 [2] : vector<2x8x8xf32> to vector<2x8xf32>
    %19 = vector.shape_cast %18 : vector<2x8xf32> to vector<2x8x1xf32>
    %20 = vector.broadcast %19 : vector<2x8x1xf32> to vector<2x8x8xf32>
    %21 = arith.subf %17, %20 : vector<2x8x8xf32>
    %22 = math.exp %21 : vector<2x8x8xf32>
    %cst_8 = arith.constant dense<0.000000e+00> : vector<2x8xf32>
    %23 = vector.multi_reduction <add>, %22, %cst_8 [2] : vector<2x8x8xf32> to vector<2x8xf32>
    %24 = vector.shape_cast %23 : vector<2x8xf32> to vector<2x8x1xf32>
    %25 = tpu.reciprocal %24 {approx = true} : vector<2x8x1xf32> -> vector<2x8x1xf32>
    %26 = vector.broadcast %25 : vector<2x8x1xf32> to vector<2x8x8xf32>
    %27 = arith.mulf %22, %26 : vector<2x8x8xf32>
    "tpu.trace_start"() <{level = 10 : i32, message = "bqk,bkd->bqd"}> : () -> ()
    %cst_9 = arith.constant dense<0.000000e+00> : vector<2x8x8xf32>
    %28 = tpu.matmul %27, %16, %cst_9 {dimension_numbers = #tpu.dot_dimension_numbers<[2], [1], [1], [2], [0, 0, 0, 1, 1, 2], [0], [0]>} : vector<2x8x8xf32>, vector<2x8x8xf32>, vector<2x8x8xf32> -> vector<2x8x8xf32>
    "tpu.trace_stop"() : () -> ()
    %29 = vector.extract_strided_slice %13 {offsets = [0, 0, 8], sizes = [2, 8, 8], strides = [1, 1, 1]} : vector<2x8x32xf32> to vector<2x8x8xf32>
    %30 = vector.extract_strided_slice %9 {offsets = [0, 0, 8], sizes = [2, 8, 8], strides = [1, 1, 1]} : vector<2x8x32xf32> to vector<2x8x8xf32>
    %31 = vector.extract_strided_slice %11 {offsets = [0, 0, 8], sizes = [2, 8, 8], strides = [1, 1, 1]} : vector<2x8x32xf32> to vector<2x8x8xf32>
    "tpu.trace_start"() <{level = 10 : i32, message = "bqd,bkd->bqk"}> : () -> ()
    %cst_10 = arith.constant dense<0.000000e+00> : vector<2x8x8xf32>
    %32 = tpu.matmul %29, %30, %cst_10 {dimension_numbers = #tpu.dot_dimension_numbers<[2], [2], [1], [1], [0, 0, 0, 1, 1, 1], [0], [0]>} : vector<2x8x8xf32>, vector<2x8x8xf32>, vector<2x8x8xf32> -> vector<2x8x8xf32>
    "tpu.trace_stop"() : () -> ()
    %cst_11 = arith.constant dense<0xFF800000> : vector<2x8xf32>
    %33 = vector.multi_reduction <maximumf>, %32, %cst_11 [2] : vector<2x8x8xf32> to vector<2x8xf32>
    %34 = vector.shape_cast %33 : vector<2x8xf32> to vector<2x8x1xf32>
    %35 = vector.broadcast %34 : vector<2x8x1xf32> to vector<2x8x8xf32>
    %36 = arith.subf %32, %35 : vector<2x8x8xf32>
    %37 = math.exp %36 : vector<2x8x8xf32>
    %cst_12 = arith.constant dense<0.000000e+00> : vector<2x8xf32>
    %38 = vector.multi_reduction <add>, %37, %cst_12 [2] : vector<2x8x8xf32> to vector<2x8xf32>
    %39 = vector.shape_cast %38 : vector<2x8xf32> to vector<2x8x1xf32>
    %40 = tpu.reciprocal %39 {approx = true} : vector<2x8x1xf32> -> vector<2x8x1xf32>
    %41 = vector.broadcast %40 : vector<2x8x1xf32> to vector<2x8x8xf32>
    %42 = arith.mulf %37, %41 : vector<2x8x8xf32>
    "tpu.trace_start"() <{level = 10 : i32, message = "bqk,bkd->bqd"}> : () -> ()
    %cst_13 = arith.constant dense<0.000000e+00> : vector<2x8x8xf32>
    %43 = tpu.matmul %42, %31, %cst_13 {dimension_numbers = #tpu.dot_dimension_numbers<[2], [1], [1], [2], [0, 0, 0, 1, 1, 2], [0], [0]>} : vector<2x8x8xf32>, vector<2x8x8xf32>, vector<2x8x8xf32> -> vector<2x8x8xf32>
    "tpu.trace_stop"() : () -> ()
    %44 = vector.extract_strided_slice %13 {offsets = [0, 0, 16], sizes = [2, 8, 8], strides = [1, 1, 1]} : vector<2x8x32xf32> to vector<2x8x8xf32>
    %45 = vector.extract_strided_slice %9 {offsets = [0, 0, 16], sizes = [2, 8, 8], strides = [1, 1, 1]} : vector<2x8x32xf32> to vector<2x8x8xf32>
    %46 = vector.extract_strided_slice %11 {offsets = [0, 0, 16], sizes = [2, 8, 8], strides = [1, 1, 1]} : vector<2x8x32xf32> to vector<2x8x8xf32>
    "tpu.trace_start"() <{level = 10 : i32, message = "bqd,bkd->bqk"}> : () -> ()
    %cst_14 = arith.constant dense<0.000000e+00> : vector<2x8x8xf32>
    %47 = tpu.matmul %44, %45, %cst_14 {dimension_numbers = #tpu.dot_dimension_numbers<[2], [2], [1], [1], [0, 0, 0, 1, 1, 1], [0], [0]>} : vector<2x8x8xf32>, vector<2x8x8xf32>, vector<2x8x8xf32> -> vector<2x8x8xf32>
    "tpu.trace_stop"() : () -> ()
    %cst_15 = arith.constant dense<0xFF800000> : vector<2x8xf32>
    %48 = vector.multi_reduction <maximumf>, %47, %cst_15 [2] : vector<2x8x8xf32> to vector<2x8xf32>
    %49 = vector.shape_cast %48 : vector<2x8xf32> to vector<2x8x1xf32>
    %50 = vector.broadcast %49 : vector<2x8x1xf32> to vector<2x8x8xf32>
    %51 = arith.subf %47, %50 : vector<2x8x8xf32>
    %52 = math.exp %51 : vector<2x8x8xf32>
    %cst_16 = arith.constant dense<0.000000e+00> : vector<2x8xf32>
    %53 = vector.multi_reduction <add>, %52, %cst_16 [2] : vector<2x8x8xf32> to vector<2x8xf32>
    %54 = vector.shape_cast %53 : vector<2x8xf32> to vector<2x8x1xf32>
    %55 = tpu.reciprocal %54 {approx = true} : vector<2x8x1xf32> -> vector<2x8x1xf32>
    %56 = vector.broadcast %55 : vector<2x8x1xf32> to vector<2x8x8xf32>
    %57 = arith.mulf %52, %56 : vector<2x8x8xf32>
    "tpu.trace_start"() <{level = 10 : i32, message = "bqk,bkd->bqd"}> : () -> ()
    %cst_17 = arith.constant dense<0.000000e+00> : vector<2x8x8xf32>
    %58 = tpu.matmul %57, %46, %cst_17 {dimension_numbers = #tpu.dot_dimension_numbers<[2], [1], [1], [2], [0, 0, 0, 1, 1, 2], [0], [0]>} : vector<2x8x8xf32>, vector<2x8x8xf32>, vector<2x8x8xf32> -> vector<2x8x8xf32>
    "tpu.trace_stop"() : () -> ()
    %59 = vector.extract_strided_slice %13 {offsets = [0, 0, 24], sizes = [2, 8, 8], strides = [1, 1, 1]} : vector<2x8x32xf32> to vector<2x8x8xf32>
    %60 = vector.extract_strided_slice %9 {offsets = [0, 0, 24], sizes = [2, 8, 8], strides = [1, 1, 1]} : vector<2x8x32xf32> to vector<2x8x8xf32>
    %61 = vector.extract_strided_slice %11 {offsets = [0, 0, 24], sizes = [2, 8, 8], strides = [1, 1, 1]} : vector<2x8x32xf32> to vector<2x8x8xf32>
    "tpu.trace_start"() <{level = 10 : i32, message = "bqd,bkd->bqk"}> : () -> ()
    %cst_18 = arith.constant dense<0.000000e+00> : vector<2x8x8xf32>
    %62 = tpu.matmul %59, %60, %cst_18 {dimension_numbers = #tpu.dot_dimension_numbers<[2], [2], [1], [1], [0, 0, 0, 1, 1, 1], [0], [0]>} : vector<2x8x8xf32>, vector<2x8x8xf32>, vector<2x8x8xf32> -> vector<2x8x8xf32>
    "tpu.trace_stop"() : () -> ()
    %cst_19 = arith.constant dense<0xFF800000> : vector<2x8xf32>
    %63 = vector.multi_reduction <maximumf>, %62, %cst_19 [2] : vector<2x8x8xf32> to vector<2x8xf32>
    %64 = vector.shape_cast %63 : vector<2x8xf32> to vector<2x8x1xf32>
    %65 = vector.broadcast %64 : vector<2x8x1xf32> to vector<2x8x8xf32>
    %66 = arith.subf %62, %65 : vector<2x8x8xf32>
    %67 = math.exp %66 : vector<2x8x8xf32>
    %cst_20 = arith.constant dense<0.000000e+00> : vector<2x8xf32>
    %68 = vector.multi_reduction <add>, %67, %cst_20 [2] : vector<2x8x8xf32> to vector<2x8xf32>
    %69 = vector.shape_cast %68 : vector<2x8xf32> to vector<2x8x1xf32>
    %70 = tpu.reciprocal %69 {approx = true} : vector<2x8x1xf32> -> vector<2x8x1xf32>
    %71 = vector.broadcast %70 : vector<2x8x1xf32> to vector<2x8x8xf32>
    %72 = arith.mulf %67, %71 : vector<2x8x8xf32>
    "tpu.trace_start"() <{level = 10 : i32, message = "bqk,bkd->bqd"}> : () -> ()
    %cst_21 = arith.constant dense<0.000000e+00> : vector<2x8x8xf32>
    %73 = tpu.matmul %72, %61, %cst_21 {dimension_numbers = #tpu.dot_dimension_numbers<[2], [1], [1], [2], [0, 0, 0, 1, 1, 2], [0], [0]>} : vector<2x8x8xf32>, vector<2x8x8xf32>, vector<2x8x8xf32> -> vector<2x8x8xf32>
    "tpu.trace_stop"() : () -> ()
    %74 = tpu.concatenate %28, %43, %58, %73 in 2 : vector<2x8x8xf32>, vector<2x8x8xf32>, vector<2x8x8xf32>, vector<2x8x8xf32> -> vector<2x8x32xf32>
    %c0_22 = arith.constant 0 : index
    %c0_23 = arith.constant 0 : index
    %c0_24 = arith.constant 0 : index
    %75 = vector.load %arg4[%c0_22, %c0_23, %c0_24] : memref<2x8x32xf32, #tpu.memory_space<vmem>>, vector<2x8x32xf32>
    tpu.vector_store %arg4[%c0_22, %c0_23, %c0_24], %74 {strides = array<i32>} : memref<2x8x32xf32, #tpu.memory_space<vmem>>, vector<2x8x32xf32>,
    return
  }
  func.func @transform_0(%arg0: i32) -> (i32, i32) {
    %c0_i32 = arith.constant 0 : i32
    %c0_i32_0 = arith.constant 0 : i32
    %c0_i32_1 = arith.constant 0 : i32
    return %c0_i32, %c0_i32_0 : i32, i32
  }
  func.func @transform_1(%arg0: i32) -> (i32, i32) {
    %c0_i32 = arith.constant 0 : i32
    %c0_i32_0 = arith.constant 0 : i32
    %c0_i32_1 = arith.constant 0 : i32
    return %c0_i32, %c0_i32_0 : i32, i32
  }
  func.func @transform_2(%arg0: i32) -> (i32, i32) {
    %c0_i32 = arith.constant 0 : i32
    %c0_i32_0 = arith.constant 0 : i32
    %c0_i32_1 = arith.constant 0 : i32
    return %c0_i32, %c0_i32_0 : i32, i32
  }
  func.func @transform_3(%arg0: i32) -> (i32, i32, i32) {
    %c0_i32 = arith.constant 0 : i32
    %c0_i32_0 = arith.constant 0 : i32
    %c0_i32_1 = arith.constant 0 : i32
    %c0_i32_2 = arith.constant 0 : i32
    return %c0_i32, %c0_i32_0, %c0_i32_1 : i32, i32, i32
  }
}

</mosaic_0001>

<llo_original>
// kernel: tpu_custom_call.1
$region0: #{tpu_custom_call.1}
  #allocation0 [shape = 'u32[]', space=smem, size = 0x4, offset = 0x4, fixed_abs, tag = 'smem constant byte address 0x4 - core index']
  #allocation1 [shape = 'u32[144,128]{1,0:T(1,128)}', space=vmem, size = 0x12000, scoped, tag = 'internal scratch']
  %s0 = inlined_call_operand.hbm [shape: f32[16,32], index: 0, kind: input, shape index: {}]
  %s1 = inlined_call_operand.hbm [shape: f32[32,96], index: 1, kind: input, shape index: {}]
  %s2 = inlined_call_operand.vmem [shape: f32[1,96], index: 2, kind: input, shape index: {}]
  %s3 = inlined_call_operand.hbm [shape: f32[2,8,32], index: 3, kind: output, shape index: {}]
  %s4 = sld [smem:[#allocation0]]
  $region30: #{tpu_custom_call.1} parent=0
    _
  %s6 = ssub.s32 1, %s4
  %s7 = scalar_select 0, %s6, %s4
  $region1: #{tpu_custom_call.1} parent=0
    #allocation2 [shape = 'u8[8192]{0}', space=vmem, size = 0x2000, scoped, tag = 'input window, operand 0, single buffered']
    #allocation3 [shape = 's32[1]{0}', space=sflag, size = 0x4, scoped, tag = 'scoped memory for tpu_custom_call.1']
    #allocation4 [shape = 's32[1]{0}', space=sflag, size = 0x4, scoped, tag = 'scoped memory for tpu_custom_call.1']
    #allocation5 [shape = 'u8[16384]{0}', space=vmem, size = 0x4000, scoped, tag = 'input window, operand 1, single buffered']
    #allocation6 [shape = 's32[1]{0}', space=sflag, size = 0x4, scoped, tag = 'scoped memory for tpu_custom_call.1']
    #allocation7 [shape = 'u8[8192]{0}', space=vmem, size = 0x2000, scoped, tag = 'output window, operand 0, single buffered']
    %8 = vsyncpa [#allocation3], 0
    %9 = vsyncpa [#allocation6], 0
    %10 = vsyncpa [#allocation4], 0
    // Predicated region
    $region2: #{tpu_custom_call.1} parent=1 // pred_check
      _
    $region3: #{tpu_custom_call.1} parent=1 // pred_check_branch
      %12 = sbr.rel (0) target = $region5
    $region4: #{tpu_custom_call.1} parent=1 // pred_region
      %s14 = ssub.s32 256, 256
      %15 = vsyncadd [#allocation3], %s14
      %s16 = sshll.u32 [#allocation2], 4
      %s17 = int_to_ptr.vmem [resolvable:$true] %s16
      %22 = dma.hbm_to_vmem [thread:$0]  %s0, 256, %s17, [#allocation3], 128, 128, 8
    $region5: #{tpu_custom_call.1} parent=1 // pred_fallthru
      _
    // Predicated region
    $region6: #{tpu_custom_call.1} parent=1 // pred_check
      _
    $region7: #{tpu_custom_call.1} parent=1 // pred_check_branch
      %24 = sbr.rel (0) target = $region9
    $region8: #{tpu_custom_call.1} parent=1 // pred_region
      %s26 = ssub.s32 512, 512
      %27 = vsyncadd [#allocation6], %s26
      %s28 = sshll.u32 [#allocation5], 4
      %s29 = int_to_ptr.vmem [resolvable:$true] %s28
      %34 = dma.hbm_to_vmem [thread:$0]  %s1, 512, %s29, [#allocation6], 128, 128, 8
    $region9: #{tpu_custom_call.1} parent=1 // pred_fallthru
      _
    // Predicated region
    $region10: #{tpu_custom_call.1} parent=1 // pred_check
      _
    $region11: #{tpu_custom_call.1} parent=1 // pred_check_branch
      %36 = sbr.rel (0) target = $region13
    $region12: #{tpu_custom_call.1} parent=1 // pred_region
      _
    $region13: #{tpu_custom_call.1} parent=1 // pred_fallthru
      _
    // Predicated region
    $region14: #{tpu_custom_call.1} parent=1 // pred_check
      _
    $region15: #{tpu_custom_call.1} parent=1 // pred_check_branch
      %38 = sbr.rel (0) target = $region17
    $region16: #{tpu_custom_call.1} parent=1 // pred_region
      %39 = dma.done [#allocation3], 256
    $region17: #{tpu_custom_call.1} parent=1 // pred_fallthru
      _
    // Predicated region
    $region18: #{tpu_custom_call.1} parent=1 // pred_check
      _
    $region19: #{tpu_custom_call.1} parent=1 // pred_check_branch
      %41 = sbr.rel (0) target = $region21
    $region20: #{tpu_custom_call.1} parent=1 // pred_region
      %42 = dma.done [#allocation6], 512
    $region21: #{tpu_custom_call.1} parent=1 // pred_fallthru
      _
    %v43 = vld [vmem:[#allocation2] sm:$0xff]
    %v44 = vld [vmem:[#allocation2 + $0x8] sm:$0xff]
    %v45 = vld [vmem:[#allocation5] sm:$0xff]
    %v46 = vld [vmem:[#allocation5 + $0x8] sm:$0xff]
    %v47 = vld [vmem:[#allocation5 + $0x10] sm:$0xff]
    %v48 = vld [vmem:[#allocation5 + $0x18] sm:$0xff]
    %v49 = vld [vmem:[%s2] sm:$0x1]
    %v51 = vlaneseq
    %v52 = vshrl.u32 %v51, 7
    %v53 = vsub.s32 0, %v52
    %v54 = vrot.slane %v49, %v53
    %vm56 = vcmask 261120
    %v58 = vsel %vm56, %v43, 0
    %v61 = vsel %vm56, %v44, 0
    %63 = vmatprep.subr.mxu0 0.0
    %64 = vmatpush1.msra.mxu0 %v45
    %65 = vmatprep.subr.mxu0 0.0
    %66 = vmatpush1.msra.mxu0 %v46
    %67 = vmatprep.subr.mxu0 0.0
    %68 = vmatpush1.msra.mxu0 %v47
    %69 = vmatprep.subr.mxu0 0.0
    %70 = vmatpush1.msra.mxu0 %v48
    %71 = vmatprep.subr.mxu0 0.0
    %72 = vmatpush1.msra.mxu0 0.0
    %73 = vmatprep.subr.mxu0 0.0
    %74 = vmatpush1.msra.mxu0 0.0
    %75 = vmatprep.subr.mxu0 0.0
    %76 = vmatpush1.msra.mxu0 0.0
    %77 = vmatprep.subr.mxu0 0.0
    %78 = vmatpush1.msra.mxu0 0.0
    %79 = vmatprep.subr.mxu0 0.0
    %80 = vmatpush1.msra.mxu0 0.0
    %81 = vmatprep.subr.mxu0 0.0
    %82 = vmatpush1.msra.mxu0 0.0
    %83 = vmatprep.subr.mxu0 0.0
    %84 = vmatpush1.msra.mxu0 0.0
    %85 = vmatprep.subr.mxu0 0.0
    %86 = vmatpush1.msra.mxu0 0.0
    %87 = vmatprep.subr.mxu0 0.0
    %88 = vmatpush1.msra.mxu0 0.0
    %89 = vmatprep.subr.mxu0 0.0
    %90 = vmatpush1.msra.mxu0 0.0
    %91 = vmatprep.subr.mxu0 0.0
    %92 = vmatpush1.msra.mxu0 0.0
    %93 = vmatprep.subr.mxu0 0.0
    %94 = vmatpush1.msra.mxu0 0.0
    %95 = vmatprep.subr.mxu0 0.0
    %96 = vmatpush1.msra.mxu0 0.0
    %97 = vmatprep.subr.mxu0 0.0
    %98 = vmatpush1.msra.mxu0 0.0
    %99 = vmatprep.subr.mxu0 0.0
    %100 = vmatpush1.msra.mxu0 0.0
    %101 = vmatprep.subr.mxu0 0.0
    %102 = vmatpush1.msra.mxu0 0.0
    %103 = vmatprep.subr.mxu0 0.0
    %104 = vmatpush1.msra.mxu0 0.0
    %105 = vmatprep.subr.mxu0 0.0
    %106 = vmatpush1.msra.mxu0 0.0
    %107 = vmatprep.subr.mxu0 0.0
    %108 = vmatpush1.msra.mxu0 0.0
    %109 = vmatprep.subr.mxu0 0.0
    %110 = vmatpush1.msra.mxu0 0.0
    %111 = vmatprep.subr.mxu0 0.0
    %112 = vmatpush1.msra.mxu0 0.0
    %113 = vmatprep.subr.mxu0 0.0
    %114 = vmatpush1.msra.mxu0 0.0
    %115 = vmatprep.subr.mxu0 0.0
    %116 = vmatpush1.msra.mxu0 0.0
    %117 = vmatprep.subr.mxu0 0.0
    %118 = vmatpush1.msra.mxu0 0.0
    %119 = vmatprep.subr.mxu0 0.0
    %120 = vmatpush1.msra.mxu0 0.0
    %121 = vmatprep.subr.mxu0 0.0
    %122 = vmatpush1.msra.mxu0 0.0
    %123 = vmatprep.subr.mxu0 0.0
    %124 = vmatpush1.msra.mxu0 0.0
    %125 = vmatprep.subr.mxu0 0.0
    %126 = vmatpush1.msra.mxu0 0.0
    %127 = vmatprep.mubr.f32.mxu0 0.0
    %128 = vmatmul.mubr.f32.gmra.mrb[0].mxu0 %v58
    %v129 = vpop.f32.mrb[0].mxu0
    %v130 = vadd.f32 %v54, %v129
    %v131 = vpop.f32.mrb[0].mxu0
    %132 = vmatprep.mubr.f32.mxu0 0.0
    %133 = vmatmul.mubr.f32.gmra.mrb[0].mxu0 %v61
    %v134 = vpop.f32.mrb[0].mxu0
    %v135 = vadd.f32 %v54, %v134
    %v136 = vpop.f32.mrb[0].mxu0
    %137 = vdwg.mxu0
    %v138 = vmul.f32 %v130, 0.35355338
    %v139 = vmul.f32 %v135, 0.35355338
    %141 = vrot.lane.b32.xlu0 %v130, 96
    %v142 = vpop.permute.xlu0 %141
    %vm143 = vcmask 64512
    %v145 = vsel %vm143, %v138, 0
    %v147 = vsel %vm143, %v142, 0
    %149 = vmatprep.subr.mxu0 0.0
    %150 = vmatpush1.xpose.msra.mxu0 %v147
    %151 = vmatprep.subr.mxu0 0.0
    %152 = vmatpush1.xpose.msra.mxu0 0.0
    %153 = vmatprep.subr.mxu0 0.0
    %154 = vmatpush1.xpose.msra.mxu0 0.0
    %155 = vmatprep.subr.mxu0 0.0
    %156 = vmatpush1.xpose.msra.mxu0 0.0
    %157 = vmatprep.subr.mxu0 0.0
    %158 = vmatpush1.xpose.msra.mxu0 0.0
    %159 = vmatprep.subr.mxu0 0.0
    %160 = vmatpush1.xpose.msra.mxu0 0.0
    %161 = vmatprep.subr.mxu0 0.0
    %162 = vmatpush1.xpose.msra.mxu0 0.0
    %163 = vmatprep.subr.mxu0 0.0
    %164 = vmatpush1.xpose.msra.mxu0 0.0
    %165 = vmatprep.subr.mxu0 0.0
    %166 = vmatpush1.xpose.msra.mxu0 0.0
    %167 = vmatprep.subr.mxu0 0.0
    %168 = vmatpush1.xpose.msra.mxu0 0.0
    %169 = vmatprep.subr.mxu0 0.0
    %170 = vmatpush1.xpose.msra.mxu0 0.0
    %171 = vmatprep.subr.mxu0 0.0
    %172 = vmatpush1.xpose.msra.mxu0 0.0
    %173 = vmatprep.subr.mxu0 0.0
    %174 = vmatpush1.xpose.msra.mxu0 0.0
    %175 = vmatprep.subr.mxu0 0.0
    %176 = vmatpush1.xpose.msra.mxu0 0.0
    %177 = vmatprep.subr.mxu0 0.0
    %178 = vmatpush1.xpose.msra.mxu0 0.0
    %179 = vmatprep.subr.mxu0 0.0
    %180 = vmatpush1.xpose.msra.mxu0 0.0
    %181 = vmatprep.subr.mxu0 0.0
    %182 = vmatpush1.xpose.msra.mxu0 0.0
    %183 = vmatprep.subr.mxu0 0.0
    %184 = vmatpush1.xpose.msra.mxu0 0.0
    %185 = vmatprep.subr.mxu0 0.0
    %186 = vmatpush1.xpose.msra.mxu0 0.0
    %187 = vmatprep.subr.mxu0 0.0
    %188 = vmatpush1.xpose.msra.mxu0 0.0
    %189 = vmatprep.subr.mxu0 0.0
    %190 = vmatpush1.xpose.msra.mxu0 0.0
    %191 = vmatprep.subr.mxu0 0.0
    %192 = vmatpush1.xpose.msra.mxu0 0.0
    %193 = vmatprep.subr.mxu0 0.0
    %194 = vmatpush1.xpose.msra.mxu0 0.0
    %195 = vmatprep.subr.mxu0 0.0
    %196 = vmatpush1.xpose.msra.mxu0 0.0
    %197 = vmatprep.subr.mxu0 0.0
    %198 = vmatpush1.xpose.msra.mxu0 0.0
    %199 = vmatprep.subr.mxu0 0.0
    %200 = vmatpush1.xpose.msra.mxu0 0.0
    %201 = vmatprep.subr.mxu0 0.0
    %202 = vmatpush1.xpose.msra.mxu0 0.0
    %203 = vmatprep.subr.mxu0 0.0
    %204 = vmatpush1.xpose.msra.mxu0 0.0
    %205 = vmatprep.subr.mxu0 0.0
    %206 = vmatpush1.xpose.msra.mxu0 0.0
    %207 = vmatprep.subr.mxu0 0.0
    %208 = vmatpush1.xpose.msra.mxu0 0.0
    %209 = vmatprep.subr.mxu0 0.0
    %210 = vmatpush1.xpose.msra.mxu0 0.0
    %211 = vmatprep.subr.mxu0 0.0
    %212 = vmatpush1.xpose.msra.mxu0 0.0
    %213 = vmatprep.mubr.f32.mxu0 0.0
    %214 = vmatmul.mubr.f32.gmra.mrb[0].mxu0 %v145
    %v215 = vpop.f32.mrb[0].mxu0
    %v216 = vadd.f32 0.0, %v215
    %v217 = vpop.f32.mrb[0].mxu0
    %218 = vdwg.mxu0
    %220 = vrot.lane.b32.xlu0 %v135, 96
    %v221 = vpop.permute.xlu0 %220
    %v223 = vsel %vm143, %v139, 0
    %v225 = vsel %vm143, %v221, 0
    %227 = vmatprep.subr.mxu0 0.0
    %228 = vmatpush1.xpose.msra.mxu0 %v225
    %229 = vmatprep.subr.mxu0 0.0
    %230 = vmatpush1.xpose.msra.mxu0 0.0
    %231 = vmatprep.subr.mxu0 0.0
    %232 = vmatpush1.xpose.msra.mxu0 0.0
    %233 = vmatprep.subr.mxu0 0.0
    %234 = vmatpush1.xpose.msra.mxu0 0.0
    %235 = vmatprep.subr.mxu0 0.0
    %236 = vmatpush1.xpose.msra.mxu0 0.0
    %237 = vmatprep.subr.mxu0 0.0
    %238 = vmatpush1.xpose.msra.mxu0 0.0
    %239 = vmatprep.subr.mxu0 0.0
    %240 = vmatpush1.xpose.msra.mxu0 0.0
    %241 = vmatprep.subr.mxu0 0.0
    %242 = vmatpush1.xpose.msra.mxu0 0.0
    %243 = vmatprep.subr.mxu0 0.0
    %244 = vmatpush1.xpose.msra.mxu0 0.0
    %245 = vmatprep.subr.mxu0 0.0
    %246 = vmatpush1.xpose.msra.mxu0 0.0
    %247 = vmatprep.subr.mxu0 0.0
    %248 = vmatpush1.xpose.msra.mxu0 0.0
    %249 = vmatprep.subr.mxu0 0.0
    %250 = vmatpush1.xpose.msra.mxu0 0.0
    %251 = vmatprep.subr.mxu0 0.0
    %252 = vmatpush1.xpose.msra.mxu0 0.0
    %253 = vmatprep.subr.mxu0 0.0
    %254 = vmatpush1.xpose.msra.mxu0 0.0
    %255 = vmatprep.subr.mxu0 0.0
    %256 = vmatpush1.xpose.msra.mxu0 0.0
    %257 = vmatprep.subr.mxu0 0.0
    %258 = vmatpush1.xpose.msra.mxu0 0.0
    %259 = vmatprep.subr.mxu0 0.0
    %260 = vmatpush1.xpose.msra.mxu0 0.0
    %261 = vmatprep.subr.mxu0 0.0
    %262 = vmatpush1.xpose.msra.mxu0 0.0
    %263 = vmatprep.subr.mxu0 0.0
    %264 = vmatpush1.xpose.msra.mxu0 0.0
    %265 = vmatprep.subr.mxu0 0.0
    %266 = vmatpush1.xpose.msra.mxu0 0.0
    %267 = vmatprep.subr.mxu0 0.0
    %268 = vmatpush1.xpose.msra.mxu0 0.0
    %269 = vmatprep.subr.mxu0 0.0
    %270 = vmatpush1.xpose.msra.mxu0 0.0
    %271 = vmatprep.subr.mxu0 0.0
    %272 = vmatpush1.xpose.msra.mxu0 0.0
    %273 = vmatprep.subr.mxu0 0.0
    %274 = vmatpush1.xpose.msra.mxu0 0.0
    %275 = vmatprep.subr.mxu0 0.0
    %276 = vmatpush1.xpose.msra.mxu0 0.0
    %277 = vmatprep.subr.mxu0 0.0
    %278 = vmatpush1.xpose.msra.mxu0 0.0
    %279 = vmatprep.subr.mxu0 0.0
    %280 = vmatpush1.xpose.msra.mxu0 0.0
    %281 = vmatprep.subr.mxu0 0.0
    %282 = vmatpush1.xpose.msra.mxu0 0.0
    %283 = vmatprep.subr.mxu0 0.0
    %284 = vmatpush1.xpose.msra.mxu0 0.0
    %285 = vmatprep.subr.mxu0 0.0
    %286 = vmatpush1.xpose.msra.mxu0 0.0
    %287 = vmatprep.subr.mxu0 0.0
    %288 = vmatpush1.xpose.msra.mxu0 0.0
    %289 = vmatprep.subr.mxu0 0.0
    %290 = vmatpush1.xpose.msra.mxu0 0.0
    %291 = vmatprep.mubr.f32.mxu0 0.0
    %292 = vmatmul.mubr.f32.gmra.mrb[0].mxu0 %v223
    %v293 = vpop.f32.mrb[0].mxu0
    %v294 = vadd.f32 0.0, %v293
    %v295 = vpop.f32.mrb[0].mxu0
    %296 = vdwg.mxu0
    %v297 = vsel %vm143, %v216, -inf
    %298 = vmax.xlane.f32.xlu0 %v297
    %v299 = vpop.xlane.xlu0 %298
    %v300 = vsel %vm143, %v294, -inf
    %301 = vmax.xlane.f32.xlu0 %v300
    %v302 = vpop.xlane.xlu0 %301
    %v303 = vsub.f32 %v216, %v299
    %v304 = vsub.f32 %v294, %v302
    %v305 = vmul.f32 %v303, 1.442695
    %v306 = vpow.pop %v305
    %v307 = vmul.f32 %v304, 1.442695
    %v308 = vpow.pop %v307
    %v309 = vsel %vm143, %v306, 0.0
    %310 = vadd.xlane.f32.xlu0 %v309
    %v311 = vpop.xlane.xlu0 %310
    %v312 = vsel %vm143, %v308, 0.0
    %313 = vadd.xlane.f32.xlu0 %v312
    %v314 = vpop.xlane.xlu0 %313
    %v315 = vrcp.pop %v311
    %v316 = vrcp.pop %v314
    %v317 = vmul.f32 %v306, %v315
    %v318 = vmul.f32 %v308, %v316
    %319 = vrot.lane.b32.xlu0 %v130, 64
    %v320 = vpop.permute.xlu0 %319
    %v323 = vsel %vm143, %v317, 0
    %325 = vmatprep.subr.mxu0 0.0
    %326 = vmatpush1.msra.mxu0 %v320
    %327 = vmatprep.subr.mxu0 0.0
    %328 = vmatpush1.msra.mxu0 0.0
    %329 = vmatprep.subr.mxu0 0.0
    %330 = vmatpush1.msra.mxu0 0.0
    %331 = vmatprep.subr.mxu0 0.0
    %332 = vmatpush1.msra.mxu0 0.0
    %333 = vmatprep.subr.mxu0 0.0
    %334 = vmatpush1.msra.mxu0 0.0
    %335 = vmatprep.subr.mxu0 0.0
    %336 = vmatpush1.msra.mxu0 0.0
    %337 = vmatprep.subr.mxu0 0.0
    %338 = vmatpush1.msra.mxu0 0.0
    %339 = vmatprep.subr.mxu0 0.0
    %340 = vmatpush1.msra.mxu0 0.0
    %341 = vmatprep.subr.mxu0 0.0
    %342 = vmatpush1.msra.mxu0 0.0
    %343 = vmatprep.subr.mxu0 0.0
    %344 = vmatpush1.msra.mxu0 0.0
    %345 = vmatprep.subr.mxu0 0.0
    %346 = vmatpush1.msra.mxu0 0.0
    %347 = vmatprep.subr.mxu0 0.0
    %348 = vmatpush1.msra.mxu0 0.0
    %349 = vmatprep.subr.mxu0 0.0
    %350 = vmatpush1.msra.mxu0 0.0
    %351 = vmatprep.subr.mxu0 0.0
    %352 = vmatpush1.msra.mxu0 0.0
    %353 = vmatprep.subr.mxu0 0.0
    %354 = vmatpush1.msra.mxu0 0.0
    %355 = vmatprep.subr.mxu0 0.0
    %356 = vmatpush1.msra.mxu0 0.0
    %357 = vmatprep.subr.mxu0 0.0
    %358 = vmatpush1.msra.mxu0 0.0
    %359 = vmatprep.subr.mxu0 0.0
    %360 = vmatpush1.msra.mxu0 0.0
    %361 = vmatprep.subr.mxu0 0.0
    %362 = vmatpush1.msra.mxu0 0.0
    %363 = vmatprep.subr.mxu0 0.0
    %364 = vmatpush1.msra.mxu0 0.0
    %365 = vmatprep.subr.mxu0 0.0
    %366 = vmatpush1.msra.mxu0 0.0
    %367 = vmatprep.subr.mxu0 0.0
    %368 = vmatpush1.msra.mxu0 0.0
    %369 = vmatprep.subr.mxu0 0.0
    %370 = vmatpush1.msra.mxu0 0.0
    %371 = vmatprep.subr.mxu0 0.0
    %372 = vmatpush1.msra.mxu0 0.0
    %373 = vmatprep.subr.mxu0 0.0
    %374 = vmatpush1.msra.mxu0 0.0
    %375 = vmatprep.subr.mxu0 0.0
    %376 = vmatpush1.msra.mxu0 0.0
    %377 = vmatprep.subr.mxu0 0.0
    %378 = vmatpush1.msra.mxu0 0.0
    %379 = vmatprep.subr.mxu0 0.0
    %380 = vmatpush1.msra.mxu0 0.0
    %381 = vmatprep.subr.mxu0 0.0
    %382 = vmatpush1.msra.mxu0 0.0
    %383 = vmatprep.subr.mxu0 0.0
    %384 = vmatpush1.msra.mxu0 0.0
    %385 = vmatprep.subr.mxu0 0.0
    %386 = vmatpush1.msra.mxu0 0.0
    %387 = vmatprep.subr.mxu0 0.0
    %388 = vmatpush1.msra.mxu0 0.0
    %389 = vmatprep.mubr.f32.mxu0 0.0
    %390 = vmatmul.mubr.f32.gmra.mrb[0].mxu0 %v323
    %v391 = vpop.f32.mrb[0].mxu0
    %v392 = vadd.f32 0.0, %v391
    %v393 = vpop.f32.mrb[0].mxu0
    %394 = vdwg.mxu0
    %395 = vrot.lane.b32.xlu0 %v135, 64
    %v396 = vpop.permute.xlu0 %395
    %v399 = vsel %vm143, %v318, 0
    %401 = vmatprep.subr.mxu0 0.0
    %402 = vmatpush1.msra.mxu0 %v396
    %403 = vmatprep.subr.mxu0 0.0
    %404 = vmatpush1.msra.mxu0 0.0
    %405 = vmatprep.subr.mxu0 0.0
    %406 = vmatpush1.msra.mxu0 0.0
    %407 = vmatprep.subr.mxu0 0.0
    %408 = vmatpush1.msra.mxu0 0.0
    %409 = vmatprep.subr.mxu0 0.0
    %410 = vmatpush1.msra.mxu0 0.0
    %411 = vmatprep.subr.mxu0 0.0
    %412 = vmatpush1.msra.mxu0 0.0
    %413 = vmatprep.subr.mxu0 0.0
    %414 = vmatpush1.msra.mxu0 0.0
    %415 = vmatprep.subr.mxu0 0.0
    %416 = vmatpush1.msra.mxu0 0.0
    %417 = vmatprep.subr.mxu0 0.0
    %418 = vmatpush1.msra.mxu0 0.0
    %419 = vmatprep.subr.mxu0 0.0
    %420 = vmatpush1.msra.mxu0 0.0
    %421 = vmatprep.subr.mxu0 0.0
    %422 = vmatpush1.msra.mxu0 0.0
    %423 = vmatprep.subr.mxu0 0.0
    %424 = vmatpush1.msra.mxu0 0.0
    %425 = vmatprep.subr.mxu0 0.0
    %426 = vmatpush1.msra.mxu0 0.0
    %427 = vmatprep.subr.mxu0 0.0
    %428 = vmatpush1.msra.mxu0 0.0
    %429 = vmatprep.subr.mxu0 0.0
    %430 = vmatpush1.msra.mxu0 0.0
    %431 = vmatprep.subr.mxu0 0.0
    %432 = vmatpush1.msra.mxu0 0.0
    %433 = vmatprep.subr.mxu0 0.0
    %434 = vmatpush1.msra.mxu0 0.0
    %435 = vmatprep.subr.mxu0 0.0
    %436 = vmatpush1.msra.mxu0 0.0
    %437 = vmatprep.subr.mxu0 0.0
    %438 = vmatpush1.msra.mxu0 0.0
    %439 = vmatprep.subr.mxu0 0.0
    %440 = vmatpush1.msra.mxu0 0.0
    %441 = vmatprep.subr.mxu0 0.0
    %442 = vmatpush1.msra.mxu0 0.0
    %443 = vmatprep.subr.mxu0 0.0
    %444 = vmatpush1.msra.mxu0 0.0
    %445 = vmatprep.subr.mxu0 0.0
    %446 = vmatpush1.msra.mxu0 0.0
    %447 = vmatprep.subr.mxu0 0.0
    %448 = vmatpush1.msra.mxu0 0.0
    %449 = vmatprep.subr.mxu0 0.0
    %450 = vmatpush1.msra.mxu0 0.0
    %451 = vmatprep.subr.mxu0 0.0
    %452 = vmatpush1.msra.mxu0 0.0
    %453 = vmatprep.subr.mxu0 0.0
    %454 = vmatpush1.msra.mxu0 0.0
    %455 = vmatprep.subr.mxu0 0.0
    %456 = vmatpush1.msra.mxu0 0.0
    %457 = vmatprep.subr.mxu0 0.0
    %458 = vmatpush1.msra.mxu0 0.0
    %459 = vmatprep.subr.mxu0 0.0
    %460 = vmatpush1.msra.mxu0 0.0
    %461 = vmatprep.subr.mxu0 0.0
    %462 = vmatpush1.msra.mxu0 0.0
    %463 = vmatprep.subr.mxu0 0.0
    %464 = vmatpush1.msra.mxu0 0.0
    %465 = vmatprep.mubr.f32.mxu0 0.0
    %466 = vmatmul.mubr.f32.gmra.mrb[0].mxu0 %v399
    %v467 = vpop.f32.mrb[0].mxu0
    %v468 = vadd.f32 0.0, %v467
    %v469 = vpop.f32.mrb[0].mxu0
    %470 = vdwg.mxu0
    %471 = vrot.lane.b32.xlu0 %v138, 120
    %v472 = vpop.permute.xlu0 %471
    %473 = vrot.lane.b32.xlu0 %v130, 88
    %v474 = vpop.permute.xlu0 %473
    %v475 = vsel %vm143, %v472, 0
    %v477 = vsel %vm143, %v474, 0
    %479 = vmatprep.subr.mxu0 0.0
    %480 = vmatpush1.xpose.msra.mxu0 %v477
    %481 = vmatprep.subr.mxu0 0.0
    %482 = vmatpush1.xpose.msra.mxu0 0.0
    %483 = vmatprep.subr.mxu0 0.0
    %484 = vmatpush1.xpose.msra.mxu0 0.0
    %485 = vmatprep.subr.mxu0 0.0
    %486 = vmatpush1.xpose.msra.mxu0 0.0
    %487 = vmatprep.subr.mxu0 0.0
    %488 = vmatpush1.xpose.msra.mxu0 0.0
    %489 = vmatprep.subr.mxu0 0.0
    %490 = vmatpush1.xpose.msra.mxu0 0.0
    %491 = vmatprep.subr.mxu0 0.0
    %492 = vmatpush1.xpose.msra.mxu0 0.0
    %493 = vmatprep.subr.mxu0 0.0
    %494 = vmatpush1.xpose.msra.mxu0 0.0
    %495 = vmatprep.subr.mxu0 0.0
    %496 = vmatpush1.xpose.msra.mxu0 0.0
    %497 = vmatprep.subr.mxu0 0.0
    %498 = vmatpush1.xpose.msra.mxu0 0.0
    %499 = vmatprep.subr.mxu0 0.0
    %500 = vmatpush1.xpose.msra.mxu0 0.0
    %501 = vmatprep.subr.mxu0 0.0
    %502 = vmatpush1.xpose.msra.mxu0 0.0
    %503 = vmatprep.subr.mxu0 0.0
    %504 = vmatpush1.xpose.msra.mxu0 0.0
    %505 = vmatprep.subr.mxu0 0.0
    %506 = vmatpush1.xpose.msra.mxu0 0.0
    %507 = vmatprep.subr.mxu0 0.0
    %508 = vmatpush1.xpose.msra.mxu0 0.0
    %509 = vmatprep.subr.mxu0 0.0
    %510 = vmatpush1.xpose.msra.mxu0 0.0
    %511 = vmatprep.subr.mxu0 0.0
    %512 = vmatpush1.xpose.msra.mxu0 0.0
    %513 = vmatprep.subr.mxu0 0.0
    %514 = vmatpush1.xpose.msra.mxu0 0.0
    %515 = vmatprep.subr.mxu0 0.0
    %516 = vmatpush1.xpose.msra.mxu0 0.0
    %517 = vmatprep.subr.mxu0 0.0
    %518 = vmatpush1.xpose.msra.mxu0 0.0
    %519 = vmatprep.subr.mxu0 0.0
    %520 = vmatpush1.xpose.msra.mxu0 0.0
    %521 = vmatprep.subr.mxu0 0.0
    %522 = vmatpush1.xpose.msra.mxu0 0.0
    %523 = vmatprep.subr.mxu0 0.0
    %524 = vmatpush1.xpose.msra.mxu0 0.0
    %525 = vmatprep.subr.mxu0 0.0
    %526 = vmatpush1.xpose.msra.mxu0 0.0
    %527 = vmatprep.subr.mxu0 0.0
    %528 = vmatpush1.xpose.msra.mxu0 0.0
    %529 = vmatprep.subr.mxu0 0.0
    %530 = vmatpush1.xpose.msra.mxu0 0.0
    %531 = vmatprep.subr.mxu0 0.0
    %532 = vmatpush1.xpose.msra.mxu0 0.0
    %533 = vmatprep.subr.mxu0 0.0
    %534 = vmatpush1.xpose.msra.mxu0 0.0
    %535 = vmatprep.subr.mxu0 0.0
    %536 = vmatpush1.xpose.msra.mxu0 0.0
    %537 = vmatprep.subr.mxu0 0.0
    %538 = vmatpush1.xpose.msra.mxu0 0.0
    %539 = vmatprep.subr.mxu0 0.0
    %540 = vmatpush1.xpose.msra.mxu0 0.0
    %541 = vmatprep.subr.mxu0 0.0
    %542 = vmatpush1.xpose.msra.mxu0 0.0
    %543 = vmatprep.mubr.f32.mxu0 0.0
    %544 = vmatmul.mubr.f32.gmra.mrb[0].mxu0 %v475
    %v545 = vpop.f32.mrb[0].mxu0
    %v546 = vadd.f32 0.0, %v545
    %v547 = vpop.f32.mrb[0].mxu0
    %548 = vdwg.mxu0
    %549 = vrot.lane.b32.xlu0 %v139, 120
    %v550 = vpop.permute.xlu0 %549
    %551 = vrot.lane.b32.xlu0 %v135, 88
    %v552 = vpop.permute.xlu0 %551
    %v553 = vsel %vm143, %v550, 0
    %v555 = vsel %vm143, %v552, 0
    %557 = vmatprep.subr.mxu0 0.0
    %558 = vmatpush1.xpose.msra.mxu0 %v555
    %559 = vmatprep.subr.mxu0 0.0
    %560 = vmatpush1.xpose.msra.mxu0 0.0
    %561 = vmatprep.subr.mxu0 0.0
    %562 = vmatpush1.xpose.msra.mxu0 0.0
    %563 = vmatprep.subr.mxu0 0.0
    %564 = vmatpush1.xpose.msra.mxu0 0.0
    %565 = vmatprep.subr.mxu0 0.0
    %566 = vmatpush1.xpose.msra.mxu0 0.0
    %567 = vmatprep.subr.mxu0 0.0
    %568 = vmatpush1.xpose.msra.mxu0 0.0
    %569 = vmatprep.subr.mxu0 0.0
    %570 = vmatpush1.xpose.msra.mxu0 0.0
    %571 = vmatprep.subr.mxu0 0.0
    %572 = vmatpush1.xpose.msra.mxu0 0.0
    %573 = vmatprep.subr.mxu0 0.0
    %574 = vmatpush1.xpose.msra.mxu0 0.0
    %575 = vmatprep.subr.mxu0 0.0
    %576 = vmatpush1.xpose.msra.mxu0 0.0
    %577 = vmatprep.subr.mxu0 0.0
    %578 = vmatpush1.xpose.msra.mxu0 0.0
    %579 = vmatprep.subr.mxu0 0.0
    %580 = vmatpush1.xpose.msra.mxu0 0.0
    %581 = vmatprep.subr.mxu0 0.0
    %582 = vmatpush1.xpose.msra.mxu0 0.0
    %583 = vmatprep.subr.mxu0 0.0
    %584 = vmatpush1.xpose.msra.mxu0 0.0
    %585 = vmatprep.subr.mxu0 0.0
    %586 = vmatpush1.xpose.msra.mxu0 0.0
    %587 = vmatprep.subr.mxu0 0.0
    %588 = vmatpush1.xpose.msra.mxu0 0.0
    %589 = vmatprep.subr.mxu0 0.0
    %590 = vmatpush1.xpose.msra.mxu0 0.0
    %591 = vmatprep.subr.mxu0 0.0
    %592 = vmatpush1.xpose.msra.mxu0 0.0
    %593 = vmatprep.subr.mxu0 0.0
    %594 = vmatpush1.xpose.msra.mxu0 0.0
    %595 = vmatprep.subr.mxu0 0.0
    %596 = vmatpush1.xpose.msra.mxu0 0.0
    %597 = vmatprep.subr.mxu0 0.0
    %598 = vmatpush1.xpose.msra.mxu0 0.0
    %599 = vmatprep.subr.mxu0 0.0
    %600 = vmatpush1.xpose.msra.mxu0 0.0
    %601 = vmatprep.subr.mxu0 0.0
    %602 = vmatpush1.xpose.msra.mxu0 0.0
    %603 = vmatprep.subr.mxu0 0.0
    %604 = vmatpush1.xpose.msra.mxu0 0.0
    %605 = vmatprep.subr.mxu0 0.0
    %606 = vmatpush1.xpose.msra.mxu0 0.0
    %607 = vmatprep.subr.mxu0 0.0
    %608 = vmatpush1.xpose.msra.mxu0 0.0
    %609 = vmatprep.subr.mxu0 0.0
    %610 = vmatpush1.xpose.msra.mxu0 0.0
    %611 = vmatprep.subr.mxu0 0.0
    %612 = vmatpush1.xpose.msra.mxu0 0.0
    %613 = vmatprep.subr.mxu0 0.0
    %614 = vmatpush1.xpose.msra.mxu0 0.0
    %615 = vmatprep.subr.mxu0 0.0
    %616 = vmatpush1.xpose.msra.mxu0 0.0
    %617 = vmatprep.subr.mxu0 0.0
    %618 = vmatpush1.xpose.msra.mxu0 0.0
    %619 = vmatprep.subr.mxu0 0.0
    %620 = vmatpush1.xpose.msra.mxu0 0.0
    %621 = vmatprep.mubr.f32.mxu0 0.0
    %622 = vmatmul.mubr.f32.gmra.mrb[0].mxu0 %v553
    %v623 = vpop.f32.mrb[0].mxu0
    %v624 = vadd.f32 0.0, %v623
    %v625 = vpop.f32.mrb[0].mxu0
    %626 = vdwg.mxu0
    %v627 = vsel %vm143, %v546, -inf
    %628 = vmax.xlane.f32.xlu0 %v627
    %v629 = vpop.xlane.xlu0 %628
    %v630 = vsel %vm143, %v624, -inf
    %631 = vmax.xlane.f32.xlu0 %v630
    %v632 = vpop.xlane.xlu0 %631
    %v633 = vsub.f32 %v546, %v629
    %v634 = vsub.f32 %v624, %v632
    %v635 = vmul.f32 %v633, 1.442695
    %v636 = vpow.pop %v635
    %v637 = vmul.f32 %v634, 1.442695
    %v638 = vpow.pop %v637
    %v639 = vsel %vm143, %v636, 0.0
    %640 = vadd.xlane.f32.xlu0 %v639
    %v641 = vpop.xlane.xlu0 %640
    %v642 = vsel %vm143, %v638, 0.0
    %643 = vadd.xlane.f32.xlu0 %v642
    %v644 = vpop.xlane.xlu0 %643
    %v645 = vrcp.pop %v641
    %v646 = vrcp.pop %v644
    %v647 = vmul.f32 %v636, %v645
    %v648 = vmul.f32 %v638, %v646
    %649 = vrot.lane.b32.xlu0 %v130, 56
    %v650 = vpop.permute.xlu0 %649
    %v653 = vsel %vm143, %v647, 0
    %655 = vmatprep.subr.mxu0 0.0
    %656 = vmatpush1.msra.mxu0 %v650
    %657 = vmatprep.subr.mxu0 0.0
    %658 = vmatpush1.msra.mxu0 0.0
    %659 = vmatprep.subr.mxu0 0.0
    %660 = vmatpush1.msra.mxu0 0.0
    %661 = vmatprep.subr.mxu0 0.0
    %662 = vmatpush1.msra.mxu0 0.0
    %663 = vmatprep.subr.mxu0 0.0
    %664 = vmatpush1.msra.mxu0 0.0
    %665 = vmatprep.subr.mxu0 0.0
    %666 = vmatpush1.msra.mxu0 0.0
    %667 = vmatprep.subr.mxu0 0.0
    %668 = vmatpush1.msra.mxu0 0.0
    %669 = vmatprep.subr.mxu0 0.0
    %670 = vmatpush1.msra.mxu0 0.0
    %671 = vmatprep.subr.mxu0 0.0
    %672 = vmatpush1.msra.mxu0 0.0
    %673 = vmatprep.subr.mxu0 0.0
    %674 = vmatpush1.msra.mxu0 0.0
    %675 = vmatprep.subr.mxu0 0.0
    %676 = vmatpush1.msra.mxu0 0.0
    %677 = vmatprep.subr.mxu0 0.0
    %678 = vmatpush1.msra.mxu0 0.0
    %679 = vmatprep.subr.mxu0 0.0
    %680 = vmatpush1.msra.mxu0 0.0
    %681 = vmatprep.subr.mxu0 0.0
    %682 = vmatpush1.msra.mxu0 0.0
    %683 = vmatprep.subr.mxu0 0.0
    %684 = vmatpush1.msra.mxu0 0.0
    %685 = vmatprep.subr.mxu0 0.0
    %686 = vmatpush1.msra.mxu0 0.0
    %687 = vmatprep.subr.mxu0 0.0
    %688 = vmatpush1.msra.mxu0 0.0
    %689 = vmatprep.subr.mxu0 0.0
    %690 = vmatpush1.msra.mxu0 0.0
    %691 = vmatprep.subr.mxu0 0.0
    %692 = vmatpush1.msra.mxu0 0.0
    %693 = vmatprep.subr.mxu0 0.0
    %694 = vmatpush1.msra.mxu0 0.0
    %695 = vmatprep.subr.mxu0 0.0
    %696 = vmatpush1.msra.mxu0 0.0
    %697 = vmatprep.subr.mxu0 0.0
    %698 = vmatpush1.msra.mxu0 0.0
    %699 = vmatprep.subr.mxu0 0.0
    %700 = vmatpush1.msra.mxu0 0.0
    %701 = vmatprep.subr.mxu0 0.0
    %702 = vmatpush1.msra.mxu0 0.0
    %703 = vmatprep.subr.mxu0 0.0
    %704 = vmatpush1.msra.mxu0 0.0
    %705 = vmatprep.subr.mxu0 0.0
    %706 = vmatpush1.msra.mxu0 0.0
    %707 = vmatprep.subr.mxu0 0.0
    %708 = vmatpush1.msra.mxu0 0.0
    %709 = vmatprep.subr.mxu0 0.0
    %710 = vmatpush1.msra.mxu0 0.0
    %711 = vmatprep.subr.mxu0 0.0
    %712 = vmatpush1.msra.mxu0 0.0
    %713 = vmatprep.subr.mxu0 0.0
    %714 = vmatpush1.msra.mxu0 0.0
    %715 = vmatprep.subr.mxu0 0.0
    %716 = vmatpush1.msra.mxu0 0.0
    %717 = vmatprep.subr.mxu0 0.0
    %718 = vmatpush1.msra.mxu0 0.0
    %719 = vmatprep.mubr.f32.mxu0 0.0
    %720 = vmatmul.mubr.f32.gmra.mrb[0].mxu0 %v653
    %v721 = vpop.f32.mrb[0].mxu0
    %v722 = vadd.f32 0.0, %v721
    %v723 = vpop.f32.mrb[0].mxu0
    %724 = vdwg.mxu0
    %725 = vrot.lane.b32.xlu0 %v135, 56
    %v726 = vpop.permute.xlu0 %725
    %v729 = vsel %vm143, %v648, 0
    %731 = vmatprep.subr.mxu0 0.0
    %732 = vmatpush1.msra.mxu0 %v726
    %733 = vmatprep.subr.mxu0 0.0
    %734 = vmatpush1.msra.mxu0 0.0
    %735 = vmatprep.subr.mxu0 0.0
    %736 = vmatpush1.msra.mxu0 0.0
    %737 = vmatprep.subr.mxu0 0.0
    %738 = vmatpush1.msra.mxu0 0.0
    %739 = vmatprep.subr.mxu0 0.0
    %740 = vmatpush1.msra.mxu0 0.0
    %741 = vmatprep.subr.mxu0 0.0
    %742 = vmatpush1.msra.mxu0 0.0
    %743 = vmatprep.subr.mxu0 0.0
    %744 = vmatpush1.msra.mxu0 0.0
    %745 = vmatprep.subr.mxu0 0.0
    %746 = vmatpush1.msra.mxu0 0.0
    %747 = vmatprep.subr.mxu0 0.0
    %748 = vmatpush1.msra.mxu0 0.0
    %749 = vmatprep.subr.mxu0 0.0
    %750 = vmatpush1.msra.mxu0 0.0
    %751 = vmatprep.subr.mxu0 0.0
    %752 = vmatpush1.msra.mxu0 0.0
    %753 = vmatprep.subr.mxu0 0.0
    %754 = vmatpush1.msra.mxu0 0.0
    %755 = vmatprep.subr.mxu0 0.0
    %756 = vmatpush1.msra.mxu0 0.0
    %757 = vmatprep.subr.mxu0 0.0
    %758 = vmatpush1.msra.mxu0 0.0
    %759 = vmatprep.subr.mxu0 0.0
    %760 = vmatpush1.msra.mxu0 0.0
    %761 = vmatprep.subr.mxu0 0.0
    %762 = vmatpush1.msra.mxu0 0.0
    %763 = vmatprep.subr.mxu0 0.0
    %764 = vmatpush1.msra.mxu0 0.0
    %765 = vmatprep.subr.mxu0 0.0
    %766 = vmatpush1.msra.mxu0 0.0
    %767 = vmatprep.subr.mxu0 0.0
    %768 = vmatpush1.msra.mxu0 0.0
    %769 = vmatprep.subr.mxu0 0.0
    %770 = vmatpush1.msra.mxu0 0.0
    %771 = vmatprep.subr.mxu0 0.0
    %772 = vmatpush1.msra.mxu0 0.0
    %773 = vmatprep.subr.mxu0 0.0
    %774 = vmatpush1.msra.mxu0 0.0
    %775 = vmatprep.subr.mxu0 0.0
    %776 = vmatpush1.msra.mxu0 0.0
    %777 = vmatprep.subr.mxu0 0.0
    %778 = vmatpush1.msra.mxu0 0.0
    %779 = vmatprep.subr.mxu0 0.0
    %780 = vmatpush1.msra.mxu0 0.0
    %781 = vmatprep.subr.mxu0 0.0
    %782 = vmatpush1.msra.mxu0 0.0
    %783 = vmatprep.subr.mxu0 0.0
    %784 = vmatpush1.msra.mxu0 0.0
    %785 = vmatprep.subr.mxu0 0.0
    %786 = vmatpush1.msra.mxu0 0.0
    %787 = vmatprep.subr.mxu0 0.0
    %788 = vmatpush1.msra.mxu0 0.0
    %789 = vmatprep.subr.mxu0 0.0
    %790 = vmatpush1.msra.mxu0 0.0
    %791 = vmatprep.subr.mxu0 0.0
    %792 = vmatpush1.msra.mxu0 0.0
    %793 = vmatprep.subr.mxu0 0.0
    %794 = vmatpush1.msra.mxu0 0.0
    %795 = vmatprep.mubr.f32.mxu0 0.0
    %796 = vmatmul.mubr.f32.gmra.mrb[0].mxu0 %v729
    %v797 = vpop.f32.mrb[0].mxu0
    %v798 = vadd.f32 0.0, %v797
    %v799 = vpop.f32.mrb[0].mxu0
    %800 = vdwg.mxu0
    %801 = vrot.lane.b32.xlu0 %v138, 112
    %v802 = vpop.permute.xlu0 %801
    %803 = vrot.lane.b32.xlu0 %v130, 80
    %v804 = vpop.permute.xlu0 %803
    %v805 = vsel %vm143, %v802, 0
    %v807 = vsel %vm143, %v804, 0
    %809 = vmatprep.subr.mxu0 0.0
    %810 = vmatpush1.xpose.msra.mxu0 %v807
    %811 = vmatprep.subr.mxu0 0.0
    %812 = vmatpush1.xpose.msra.mxu0 0.0
    %813 = vmatprep.subr.mxu0 0.0
    %814 = vmatpush1.xpose.msra.mxu0 0.0
    %815 = vmatprep.subr.mxu0 0.0
    %816 = vmatpush1.xpose.msra.mxu0 0.0
    %817 = vmatprep.subr.mxu0 0.0
    %818 = vmatpush1.xpose.msra.mxu0 0.0
    %819 = vmatprep.subr.mxu0 0.0
    %820 = vmatpush1.xpose.msra.mxu0 0.0
    %821 = vmatprep.subr.mxu0 0.0
    %822 = vmatpush1.xpose.msra.mxu0 0.0
    %823 = vmatprep.subr.mxu0 0.0
    %824 = vmatpush1.xpose.msra.mxu0 0.0
    %825 = vmatprep.subr.mxu0 0.0
    %826 = vmatpush1.xpose.msra.mxu0 0.0
    %827 = vmatprep.subr.mxu0 0.0
    %828 = vmatpush1.xpose.msra.mxu0 0.0
    %829 = vmatprep.subr.mxu0 0.0
    %830 = vmatpush1.xpose.msra.mxu0 0.0
    %831 = vmatprep.subr.mxu0 0.0
    %832 = vmatpush1.xpose.msra.mxu0 0.0
    %833 = vmatprep.subr.mxu0 0.0
    %834 = vmatpush1.xpose.msra.mxu0 0.0
    %835 = vmatprep.subr.mxu0 0.0
    %836 = vmatpush1.xpose.msra.mxu0 0.0
    %837 = vmatprep.subr.mxu0 0.0
    %838 = vmatpush1.xpose.msra.mxu0 0.0
    %839 = vmatprep.subr.mxu0 0.0
    %840 = vmatpush1.xpose.msra.mxu0 0.0
    %841 = vmatprep.subr.mxu0 0.0
    %842 = vmatpush1.xpose.msra.mxu0 0.0
    %843 = vmatprep.subr.mxu0 0.0
    %844 = vmatpush1.xpose.msra.mxu0 0.0
    %845 = vmatprep.subr.mxu0 0.0
    %846 = vmatpush1.xpose.msra.mxu0 0.0
    %847 = vmatprep.subr.mxu0 0.0
    %848 = vmatpush1.xpose.msra.mxu0 0.0
    %849 = vmatprep.subr.mxu0 0.0
    %850 = vmatpush1.xpose.msra.mxu0 0.0
    %851 = vmatprep.subr.mxu0 0.0
    %852 = vmatpush1.xpose.msra.mxu0 0.0
    %853 = vmatprep.subr.mxu0 0.0
    %854 = vmatpush1.xpose.msra.mxu0 0.0
    %855 = vmatprep.subr.mxu0 0.0
    %856 = vmatpush1.xpose.msra.mxu0 0.0
    %857 = vmatprep.subr.mxu0 0.0
    %858 = vmatpush1.xpose.msra.mxu0 0.0
    %859 = vmatprep.subr.mxu0 0.0
    %860 = vmatpush1.xpose.msra.mxu0 0.0
    %861 = vmatprep.subr.mxu0 0.0
    %862 = vmatpush1.xpose.msra.mxu0 0.0
    %863 = vmatprep.subr.mxu0 0.0
    %864 = vmatpush1.xpose.msra.mxu0 0.0
    %865 = vmatprep.subr.mxu0 0.0
    %866 = vmatpush1.xpose.msra.mxu0 0.0
    %867 = vmatprep.subr.mxu0 0.0
    %868 = vmatpush1.xpose.msra.mxu0 0.0
    %869 = vmatprep.subr.mxu0 0.0
    %870 = vmatpush1.xpose.msra.mxu0 0.0
    %871 = vmatprep.subr.mxu0 0.0
    %872 = vmatpush1.xpose.msra.mxu0 0.0
    %873 = vmatprep.mubr.f32.mxu0 0.0
    %874 = vmatmul.mubr.f32.gmra.mrb[0].mxu0 %v805
    %v875 = vpop.f32.mrb[0].mxu0
    %v876 = vadd.f32 0.0, %v875
    %v877 = vpop.f32.mrb[0].mxu0
    %878 = vdwg.mxu0
    %879 = vrot.lane.b32.xlu0 %v139, 112
    %v880 = vpop.permute.xlu0 %879
    %881 = vrot.lane.b32.xlu0 %v135, 80
    %v882 = vpop.permute.xlu0 %881
    %v883 = vsel %vm143, %v880, 0
    %v885 = vsel %vm143, %v882, 0
    %887 = vmatprep.subr.mxu0 0.0
    %888 = vmatpush1.xpose.msra.mxu0 %v885
    %889 = vmatprep.subr.mxu0 0.0
    %890 = vmatpush1.xpose.msra.mxu0 0.0
    %891 = vmatprep.subr.mxu0 0.0
    %892 = vmatpush1.xpose.msra.mxu0 0.0
    %893 = vmatprep.subr.mxu0 0.0
    %894 = vmatpush1.xpose.msra.mxu0 0.0
    %895 = vmatprep.subr.mxu0 0.0
    %896 = vmatpush1.xpose.msra.mxu0 0.0
    %897 = vmatprep.subr.mxu0 0.0
    %898 = vmatpush1.xpose.msra.mxu0 0.0
    %899 = vmatprep.subr.mxu0 0.0
    %900 = vmatpush1.xpose.msra.mxu0 0.0
    %901 = vmatprep.subr.mxu0 0.0
    %902 = vmatpush1.xpose.msra.mxu0 0.0
    %903 = vmatprep.subr.mxu0 0.0
    %904 = vmatpush1.xpose.msra.mxu0 0.0
    %905 = vmatprep.subr.mxu0 0.0
    %906 = vmatpush1.xpose.msra.mxu0 0.0
    %907 = vmatprep.subr.mxu0 0.0
    %908 = vmatpush1.xpose.msra.mxu0 0.0
    %909 = vmatprep.subr.mxu0 0.0
    %910 = vmatpush1.xpose.msra.mxu0 0.0
    %911 = vmatprep.subr.mxu0 0.0
    %912 = vmatpush1.xpose.msra.mxu0 0.0
    %913 = vmatprep.subr.mxu0 0.0
    %914 = vmatpush1.xpose.msra.mxu0 0.0
    %915 = vmatprep.subr.mxu0 0.0
    %916 = vmatpush1.xpose.msra.mxu0 0.0
    %917 = vmatprep.subr.mxu0 0.0
    %918 = vmatpush1.xpose.msra.mxu0 0.0
    %919 = vmatprep.subr.mxu0 0.0
    %920 = vmatpush1.xpose.msra.mxu0 0.0
    %921 = vmatprep.subr.mxu0 0.0
    %922 = vmatpush1.xpose.msra.mxu0 0.0
    %923 = vmatprep.subr.mxu0 0.0
    %924 = vmatpush1.xpose.msra.mxu0 0.0
    %925 = vmatprep.subr.mxu0 0.0
    %926 = vmatpush1.xpose.msra.mxu0 0.0
    %927 = vmatprep.subr.mxu0 0.0
    %928 = vmatpush1.xpose.msra.mxu0 0.0
    %929 = vmatprep.subr.mxu0 0.0
    %930 = vmatpush1.xpose.msra.mxu0 0.0
    %931 = vmatprep.subr.mxu0 0.0
    %932 = vmatpush1.xpose.msra.mxu0 0.0
    %933 = vmatprep.subr.mxu0 0.0
    %934 = vmatpush1.xpose.msra.mxu0 0.0
    %935 = vmatprep.subr.mxu0 0.0
    %936 = vmatpush1.xpose.msra.mxu0 0.0
    %937 = vmatprep.subr.mxu0 0.0
    %938 = vmatpush1.xpose.msra.mxu0 0.0
    %939 = vmatprep.subr.mxu0 0.0
    %940 = vmatpush1.xpose.msra.mxu0 0.0
    %941 = vmatprep.subr.mxu0 0.0
    %942 = vmatpush1.xpose.msra.mxu0 0.0
    %943 = vmatprep.subr.mxu0 0.0
    %944 = vmatpush1.xpose.msra.mxu0 0.0
    %945 = vmatprep.subr.mxu0 0.0
    %946 = vmatpush1.xpose.msra.mxu0 0.0
    %947 = vmatprep.subr.mxu0 0.0
    %948 = vmatpush1.xpose.msra.mxu0 0.0
    %949 = vmatprep.subr.mxu0 0.0
    %950 = vmatpush1.xpose.msra.mxu0 0.0
    %951 = vmatprep.mubr.f32.mxu0 0.0
    %952 = vmatmul.mubr.f32.gmra.mrb[0].mxu0 %v883
    %v953 = vpop.f32.mrb[0].mxu0
    %v954 = vadd.f32 0.0, %v953
    %v955 = vpop.f32.mrb[0].mxu0
    %956 = vdwg.mxu0
    %v957 = vsel %vm143, %v876, -inf
    %958 = vmax.xlane.f32.xlu0 %v957
    %v959 = vpop.xlane.xlu0 %958
    %v960 = vsel %vm143, %v954, -inf
    %961 = vmax.xlane.f32.xlu0 %v960
    %v962 = vpop.xlane.xlu0 %961
    %v963 = vsub.f32 %v876, %v959
    %v964 = vsub.f32 %v954, %v962
    %v965 = vmul.f32 %v963, 1.442695
    %v966 = vpow.pop %v965
    %v967 = vmul.f32 %v964, 1.442695
    %v968 = vpow.pop %v967
    %v969 = vsel %vm143, %v966, 0.0
    %970 = vadd.xlane.f32.xlu0 %v969
    %v971 = vpop.xlane.xlu0 %970
    %v972 = vsel %vm143, %v968, 0.0
    %973 = vadd.xlane.f32.xlu0 %v972
    %v974 = vpop.xlane.xlu0 %973
    %v975 = vrcp.pop %v971
    %v976 = vrcp.pop %v974
    %v977 = vmul.f32 %v966, %v975
    %v978 = vmul.f32 %v968, %v976
    %979 = vrot.lane.b32.xlu0 %v130, 48
    %v980 = vpop.permute.xlu0 %979
    %v983 = vsel %vm143, %v977, 0
    %985 = vmatprep.subr.mxu0 0.0
    %986 = vmatpush1.msra.mxu0 %v980
    %987 = vmatprep.subr.mxu0 0.0
    %988 = vmatpush1.msra.mxu0 0.0
    %989 = vmatprep.subr.mxu0 0.0
    %990 = vmatpush1.msra.mxu0 0.0
    %991 = vmatprep.subr.mxu0 0.0
    %992 = vmatpush1.msra.mxu0 0.0
    %993 = vmatprep.subr.mxu0 0.0
    %994 = vmatpush1.msra.mxu0 0.0
    %995 = vmatprep.subr.mxu0 0.0
    %996 = vmatpush1.msra.mxu0 0.0
    %997 = vmatprep.subr.mxu0 0.0
    %998 = vmatpush1.msra.mxu0 0.0
    %999 = vmatprep.subr.mxu0 0.0
    %1000 = vmatpush1.msra.mxu0 0.0
    %1001 = vmatprep.subr.mxu0 0.0
    %1002 = vmatpush1.msra.mxu0 0.0
    %1003 = vmatprep.subr.mxu0 0.0
    %1004 = vmatpush1.msra.mxu0 0.0
    %1005 = vmatprep.subr.mxu0 0.0
    %1006 = vmatpush1.msra.mxu0 0.0
    %1007 = vmatprep.subr.mxu0 0.0
    %1008 = vmatpush1.msra.mxu0 0.0
    %1009 = vmatprep.subr.mxu0 0.0
    %1010 = vmatpush1.msra.mxu0 0.0
    %1011 = vmatprep.subr.mxu0 0.0
    %1012 = vmatpush1.msra.mxu0 0.0
    %1013 = vmatprep.subr.mxu0 0.0
    %1014 = vmatpush1.msra.mxu0 0.0
    %1015 = vmatprep.subr.mxu0 0.0
    %1016 = vmatpush1.msra.mxu0 0.0
    %1017 = vmatprep.subr.mxu0 0.0
    %1018 = vmatpush1.msra.mxu0 0.0
    %1019 = vmatprep.subr.mxu0 0.0
    %1020 = vmatpush1.msra.mxu0 0.0
    %1021 = vmatprep.subr.mxu0 0.0
    %1022 = vmatpush1.msra.mxu0 0.0
    %1023 = vmatprep.subr.mxu0 0.0
    %1024 = vmatpush1.msra.mxu0 0.0
    %1025 = vmatprep.subr.mxu0 0.0
    %1026 = vmatpush1.msra.mxu0 0.0
    %1027 = vmatprep.subr.mxu0 0.0
    %1028 = vmatpush1.msra.mxu0 0.0
    %1029 = vmatprep.subr.mxu0 0.0
    %1030 = vmatpush1.msra.mxu0 0.0
    %1031 = vmatprep.subr.mxu0 0.0
    %1032 = vmatpush1.msra.mxu0 0.0
    %1033 = vmatprep.subr.mxu0 0.0
    %1034 = vmatpush1.msra.mxu0 0.0
    %1035 = vmatprep.subr.mxu0 0.0
    %1036 = vmatpush1.msra.mxu0 0.0
    %1037 = vmatprep.subr.mxu0 0.0
    %1038 = vmatpush1.msra.mxu0 0.0
    %1039 = vmatprep.subr.mxu0 0.0
    %1040 = vmatpush1.msra.mxu0 0.0
    %1041 = vmatprep.subr.mxu0 0.0
    %1042 = vmatpush1.msra.mxu0 0.0
    %1043 = vmatprep.subr.mxu0 0.0
    %1044 = vmatpush1.msra.mxu0 0.0
    %1045 = vmatprep.subr.mxu0 0.0
    %1046 = vmatpush1.msra.mxu0 0.0
    %1047 = vmatprep.subr.mxu0 0.0
    %1048 = vmatpush1.msra.mxu0 0.0
    %1049 = vmatprep.mubr.f32.mxu0 0.0
    %1050 = vmatmul.mubr.f32.gmra.mrb[0].mxu0 %v983
    %v1051 = vpop.f32.mrb[0].mxu0
    %v1052 = vadd.f32 0.0, %v1051
    %v1053 = vpop.f32.mrb[0].mxu0
    %1054 = vdwg.mxu0
    %1055 = vrot.lane.b32.xlu0 %v135, 48
    %v1056 = vpop.permute.xlu0 %1055
    %v1059 = vsel %vm143, %v978, 0
    %1061 = vmatprep.subr.mxu0 0.0
    %1062 = vmatpush1.msra.mxu0 %v1056
    %1063 = vmatprep.subr.mxu0 0.0
    %1064 = vmatpush1.msra.mxu0 0.0
    %1065 = vmatprep.subr.mxu0 0.0
    %1066 = vmatpush1.msra.mxu0 0.0
    %1067 = vmatprep.subr.mxu0 0.0
    %1068 = vmatpush1.msra.mxu0 0.0
    %1069 = vmatprep.subr.mxu0 0.0
    %1070 = vmatpush1.msra.mxu0 0.0
    %1071 = vmatprep.subr.mxu0 0.0
    %1072 = vmatpush1.msra.mxu0 0.0
    %1073 = vmatprep.subr.mxu0 0.0
    %1074 = vmatpush1.msra.mxu0 0.0
    %1075 = vmatprep.subr.mxu0 0.0
    %1076 = vmatpush1.msra.mxu0 0.0
    %1077 = vmatprep.subr.mxu0 0.0
    %1078 = vmatpush1.msra.mxu0 0.0
    %1079 = vmatprep.subr.mxu0 0.0
    %1080 = vmatpush1.msra.mxu0 0.0
    %1081 = vmatprep.subr.mxu0 0.0
    %1082 = vmatpush1.msra.mxu0 0.0
    %1083 = vmatprep.subr.mxu0 0.0
    %1084 = vmatpush1.msra.mxu0 0.0
    %1085 = vmatprep.subr.mxu0 0.0
    %1086 = vmatpush1.msra.mxu0 0.0
    %1087 = vmatprep.subr.mxu0 0.0
    %1088 = vmatpush1.msra.mxu0 0.0
    %1089 = vmatprep.subr.mxu0 0.0
    %1090 = vmatpush1.msra.mxu0 0.0
    %1091 = vmatprep.subr.mxu0 0.0
    %1092 = vmatpush1.msra.mxu0 0.0
    %1093 = vmatprep.subr.mxu0 0.0
    %1094 = vmatpush1.msra.mxu0 0.0
    %1095 = vmatprep.subr.mxu0 0.0
    %1096 = vmatpush1.msra.mxu0 0.0
    %1097 = vmatprep.subr.mxu0 0.0
    %1098 = vmatpush1.msra.mxu0 0.0
    %1099 = vmatprep.subr.mxu0 0.0
    %1100 = vmatpush1.msra.mxu0 0.0
    %1101 = vmatprep.subr.mxu0 0.0
    %1102 = vmatpush1.msra.mxu0 0.0
    %1103 = vmatprep.subr.mxu0 0.0
    %1104 = vmatpush1.msra.mxu0 0.0
    %1105 = vmatprep.subr.mxu0 0.0
    %1106 = vmatpush1.msra.mxu0 0.0
    %1107 = vmatprep.subr.mxu0 0.0
    %1108 = vmatpush1.msra.mxu0 0.0
    %1109 = vmatprep.subr.mxu0 0.0
    %1110 = vmatpush1.msra.mxu0 0.0
    %1111 = vmatprep.subr.mxu0 0.0
    %1112 = vmatpush1.msra.mxu0 0.0
    %1113 = vmatprep.subr.mxu0 0.0
    %1114 = vmatpush1.msra.mxu0 0.0
    %1115 = vmatprep.subr.mxu0 0.0
    %1116 = vmatpush1.msra.mxu0 0.0
    %1117 = vmatprep.subr.mxu0 0.0
    %1118 = vmatpush1.msra.mxu0 0.0
    %1119 = vmatprep.subr.mxu0 0.0
    %1120 = vmatpush1.msra.mxu0 0.0
    %1121 = vmatprep.subr.mxu0 0.0
    %1122 = vmatpush1.msra.mxu0 0.0
    %1123 = vmatprep.subr.mxu0 0.0
    %1124 = vmatpush1.msra.mxu0 0.0
    %1125 = vmatprep.mubr.f32.mxu0 0.0
    %1126 = vmatmul.mubr.f32.gmra.mrb[0].mxu0 %v1059
    %v1127 = vpop.f32.mrb[0].mxu0
    %v1128 = vadd.f32 0.0, %v1127
    %v1129 = vpop.f32.mrb[0].mxu0
    %1130 = vdwg.mxu0
    %1131 = vrot.lane.b32.xlu0 %v138, 104
    %v1132 = vpop.permute.xlu0 %1131
    %1133 = vrot.lane.b32.xlu0 %v130, 72
    %v1134 = vpop.permute.xlu0 %1133
    %v1135 = vsel %vm143, %v1132, 0
    %v1137 = vsel %vm143, %v1134, 0
    %1139 = vmatprep.subr.mxu0 0.0
    %1140 = vmatpush1.xpose.msra.mxu0 %v1137
    %1141 = vmatprep.subr.mxu0 0.0
    %1142 = vmatpush1.xpose.msra.mxu0 0.0
    %1143 = vmatprep.subr.mxu0 0.0
    %1144 = vmatpush1.xpose.msra.mxu0 0.0
    %1145 = vmatprep.subr.mxu0 0.0
    %1146 = vmatpush1.xpose.msra.mxu0 0.0
    %1147 = vmatprep.subr.mxu0 0.0
    %1148 = vmatpush1.xpose.msra.mxu0 0.0
    %1149 = vmatprep.subr.mxu0 0.0
    %1150 = vmatpush1.xpose.msra.mxu0 0.0
    %1151 = vmatprep.subr.mxu0 0.0
    %1152 = vmatpush1.xpose.msra.mxu0 0.0
    %1153 = vmatprep.subr.mxu0 0.0
    %1154 = vmatpush1.xpose.msra.mxu0 0.0
    %1155 = vmatprep.subr.mxu0 0.0
    %1156 = vmatpush1.xpose.msra.mxu0 0.0
    %1157 = vmatprep.subr.mxu0 0.0
    %1158 = vmatpush1.xpose.msra.mxu0 0.0
    %1159 = vmatprep.subr.mxu0 0.0
    %1160 = vmatpush1.xpose.msra.mxu0 0.0
    %1161 = vmatprep.subr.mxu0 0.0
    %1162 = vmatpush1.xpose.msra.mxu0 0.0
    %1163 = vmatprep.subr.mxu0 0.0
    %1164 = vmatpush1.xpose.msra.mxu0 0.0
    %1165 = vmatprep.subr.mxu0 0.0
    %1166 = vmatpush1.xpose.msra.mxu0 0.0
    %1167 = vmatprep.subr.mxu0 0.0
    %1168 = vmatpush1.xpose.msra.mxu0 0.0
    %1169 = vmatprep.subr.mxu0 0.0
    %1170 = vmatpush1.xpose.msra.mxu0 0.0
    %1171 = vmatprep.subr.mxu0 0.0
    %1172 = vmatpush1.xpose.msra.mxu0 0.0
    %1173 = vmatprep.subr.mxu0 0.0
    %1174 = vmatpush1.xpose.msra.mxu0 0.0
    %1175 = vmatprep.subr.mxu0 0.0
    %1176 = vmatpush1.xpose.msra.mxu0 0.0
    %1177 = vmatprep.subr.mxu0 0.0
    %1178 = vmatpush1.xpose.msra.mxu0 0.0
    %1179 = vmatprep.subr.mxu0 0.0
    %1180 = vmatpush1.xpose.msra.mxu0 0.0
    %1181 = vmatprep.subr.mxu0 0.0
    %1182 = vmatpush1.xpose.msra.mxu0 0.0
    %1183 = vmatprep.subr.mxu0 0.0
    %1184 = vmatpush1.xpose.msra.mxu0 0.0
    %1185 = vmatprep.subr.mxu0 0.0
    %1186 = vmatpush1.xpose.msra.mxu0 0.0
    %1187 = vmatprep.subr.mxu0 0.0
    %1188 = vmatpush1.xpose.msra.mxu0 0.0
    %1189 = vmatprep.subr.mxu0 0.0
    %1190 = vmatpush1.xpose.msra.mxu0 0.0
    %1191 = vmatprep.subr.mxu0 0.0
    %1192 = vmatpush1.xpose.msra.mxu0 0.0
    %1193 = vmatprep.subr.mxu0 0.0
    %1194 = vmatpush1.xpose.msra.mxu0 0.0
    %1195 = vmatprep.subr.mxu0 0.0
    %1196 = vmatpush1.xpose.msra.mxu0 0.0
    %1197 = vmatprep.subr.mxu0 0.0
    %1198 = vmatpush1.xpose.msra.mxu0 0.0
    %1199 = vmatprep.subr.mxu0 0.0
    %1200 = vmatpush1.xpose.msra.mxu0 0.0
    %1201 = vmatprep.subr.mxu0 0.0
    %1202 = vmatpush1.xpose.msra.mxu0 0.0
    %1203 = vmatprep.mubr.f32.mxu0 0.0
    %1204 = vmatmul.mubr.f32.gmra.mrb[0].mxu0 %v1135
    %v1205 = vpop.f32.mrb[0].mxu0
    %v1206 = vadd.f32 0.0, %v1205
    %v1207 = vpop.f32.mrb[0].mxu0
    %1208 = vdwg.mxu0
    %1209 = vrot.lane.b32.xlu0 %v139, 104
    %v1210 = vpop.permute.xlu0 %1209
    %1211 = vrot.lane.b32.xlu0 %v135, 72
    %v1212 = vpop.permute.xlu0 %1211
    %v1213 = vsel %vm143, %v1210, 0
    %v1215 = vsel %vm143, %v1212, 0
    %1217 = vmatprep.subr.mxu0 0.0
    %1218 = vmatpush1.xpose.msra.mxu0 %v1215
    %1219 = vmatprep.subr.mxu0 0.0
    %1220 = vmatpush1.xpose.msra.mxu0 0.0
    %1221 = vmatprep.subr.mxu0 0.0
    %1222 = vmatpush1.xpose.msra.mxu0 0.0
    %1223 = vmatprep.subr.mxu0 0.0
    %1224 = vmatpush1.xpose.msra.mxu0 0.0
    %1225 = vmatprep.subr.mxu0 0.0
    %1226 = vmatpush1.xpose.msra.mxu0 0.0
    %1227 = vmatprep.subr.mxu0 0.0
    %1228 = vmatpush1.xpose.msra.mxu0 0.0
    %1229 = vmatprep.subr.mxu0 0.0
    %1230 = vmatpush1.xpose.msra.mxu0 0.0
    %1231 = vmatprep.subr.mxu0 0.0
    %1232 = vmatpush1.xpose.msra.mxu0 0.0
    %1233 = vmatprep.subr.mxu0 0.0
    %1234 = vmatpush1.xpose.msra.mxu0 0.0
    %1235 = vmatprep.subr.mxu0 0.0
    %1236 = vmatpush1.xpose.msra.mxu0 0.0
    %1237 = vmatprep.subr.mxu0 0.0
    %1238 = vmatpush1.xpose.msra.mxu0 0.0
    %1239 = vmatprep.subr.mxu0 0.0
    %1240 = vmatpush1.xpose.msra.mxu0 0.0
    %1241 = vmatprep.subr.mxu0 0.0
    %1242 = vmatpush1.xpose.msra.mxu0 0.0
    %1243 = vmatprep.subr.mxu0 0.0
    %1244 = vmatpush1.xpose.msra.mxu0 0.0
    %1245 = vmatprep.subr.mxu0 0.0
    %1246 = vmatpush1.xpose.msra.mxu0 0.0
    %1247 = vmatprep.subr.mxu0 0.0
    %1248 = vmatpush1.xpose.msra.mxu0 0.0
    %1249 = vmatprep.subr.mxu0 0.0
    %1250 = vmatpush1.xpose.msra.mxu0 0.0
    %1251 = vmatprep.subr.mxu0 0.0
    %1252 = vmatpush1.xpose.msra.mxu0 0.0
    %1253 = vmatprep.subr.mxu0 0.0
    %1254 = vmatpush1.xpose.msra.mxu0 0.0
    %1255 = vmatprep.subr.mxu0 0.0
    %1256 = vmatpush1.xpose.msra.mxu0 0.0
    %1257 = vmatprep.subr.mxu0 0.0
    %1258 = vmatpush1.xpose.msra.mxu0 0.0
    %1259 = vmatprep.subr.mxu0 0.0
    %1260 = vmatpush1.xpose.msra.mxu0 0.0
    %1261 = vmatprep.subr.mxu0 0.0
    %1262 = vmatpush1.xpose.msra.mxu0 0.0
    %1263 = vmatprep.subr.mxu0 0.0
    %1264 = vmatpush1.xpose.msra.mxu0 0.0
    %1265 = vmatprep.subr.mxu0 0.0
    %1266 = vmatpush1.xpose.msra.mxu0 0.0
    %1267 = vmatprep.subr.mxu0 0.0
    %1268 = vmatpush1.xpose.msra.mxu0 0.0
    %1269 = vmatprep.subr.mxu0 0.0
    %1270 = vmatpush1.xpose.msra.mxu0 0.0
    %1271 = vmatprep.subr.mxu0 0.0
    %1272 = vmatpush1.xpose.msra.mxu0 0.0
    %1273 = vmatprep.subr.mxu0 0.0
    %1274 = vmatpush1.xpose.msra.mxu0 0.0
    %1275 = vmatprep.subr.mxu0 0.0
    %1276 = vmatpush1.xpose.msra.mxu0 0.0
    %1277 = vmatprep.subr.mxu0 0.0
    %1278 = vmatpush1.xpose.msra.mxu0 0.0
    %1279 = vmatprep.subr.mxu0 0.0
    %1280 = vmatpush1.xpose.msra.mxu0 0.0
    %1281 = vmatprep.mubr.f32.mxu0 0.0
    %1282 = vmatmul.mubr.f32.gmra.mrb[0].mxu0 %v1213
    %v1283 = vpop.f32.mrb[0].mxu0
    %v1284 = vadd.f32 0.0, %v1283
    %v1285 = vpop.f32.mrb[0].mxu0
    %1286 = vdwg.mxu0
    %v1287 = vsel %vm143, %v1206, -inf
    %1288 = vmax.xlane.f32.xlu0 %v1287
    %v1289 = vpop.xlane.xlu0 %1288
    %v1290 = vsel %vm143, %v1284, -inf
    %1291 = vmax.xlane.f32.xlu0 %v1290
    %v1292 = vpop.xlane.xlu0 %1291
    %v1293 = vsub.f32 %v1206, %v1289
    %v1294 = vsub.f32 %v1284, %v1292
    %v1295 = vmul.f32 %v1293, 1.442695
    %v1296 = vpow.pop %v1295
    %v1297 = vmul.f32 %v1294, 1.442695
    %v1298 = vpow.pop %v1297
    %v1299 = vsel %vm143, %v1296, 0.0
    %1300 = vadd.xlane.f32.xlu0 %v1299
    %v1301 = vpop.xlane.xlu0 %1300
    %v1302 = vsel %vm143, %v1298, 0.0
    %1303 = vadd.xlane.f32.xlu0 %v1302
    %v1304 = vpop.xlane.xlu0 %1303
    %v1305 = vrcp.pop %v1301
    %v1306 = vrcp.pop %v1304
    %v1307 = vmul.f32 %v1296, %v1305
    %v1308 = vmul.f32 %v1298, %v1306
    %1309 = vrot.lane.b32.xlu0 %v130, 40
    %v1310 = vpop.permute.xlu0 %1309
    %v1313 = vsel %vm143, %v1307, 0
    %1315 = vmatprep.subr.mxu0 0.0
    %1316 = vmatpush1.msra.mxu0 %v1310
    %1317 = vmatprep.subr.mxu0 0.0
    %1318 = vmatpush1.msra.mxu0 0.0
    %1319 = vmatprep.subr.mxu0 0.0
    %1320 = vmatpush1.msra.mxu0 0.0
    %1321 = vmatprep.subr.mxu0 0.0
    %1322 = vmatpush1.msra.mxu0 0.0
    %1323 = vmatprep.subr.mxu0 0.0
    %1324 = vmatpush1.msra.mxu0 0.0
    %1325 = vmatprep.subr.mxu0 0.0
    %1326 = vmatpush1.msra.mxu0 0.0
    %1327 = vmatprep.subr.mxu0 0.0
    %1328 = vmatpush1.msra.mxu0 0.0
    %1329 = vmatprep.subr.mxu0 0.0
    %1330 = vmatpush1.msra.mxu0 0.0
    %1331 = vmatprep.subr.mxu0 0.0
    %1332 = vmatpush1.msra.mxu0 0.0
    %1333 = vmatprep.subr.mxu0 0.0
    %1334 = vmatpush1.msra.mxu0 0.0
    %1335 = vmatprep.subr.mxu0 0.0
    %1336 = vmatpush1.msra.mxu0 0.0
    %1337 = vmatprep.subr.mxu0 0.0
    %1338 = vmatpush1.msra.mxu0 0.0
    %1339 = vmatprep.subr.mxu0 0.0
    %1340 = vmatpush1.msra.mxu0 0.0
    %1341 = vmatprep.subr.mxu0 0.0
    %1342 = vmatpush1.msra.mxu0 0.0
    %1343 = vmatprep.subr.mxu0 0.0
    %1344 = vmatpush1.msra.mxu0 0.0
    %1345 = vmatprep.subr.mxu0 0.0
    %1346 = vmatpush1.msra.mxu0 0.0
    %1347 = vmatprep.subr.mxu0 0.0
    %1348 = vmatpush1.msra.mxu0 0.0
    %1349 = vmatprep.subr.mxu0 0.0
    %1350 = vmatpush1.msra.mxu0 0.0
    %1351 = vmatprep.subr.mxu0 0.0
    %1352 = vmatpush1.msra.mxu0 0.0
    %1353 = vmatprep.subr.mxu0 0.0
    %1354 = vmatpush1.msra.mxu0 0.0
    %1355 = vmatprep.subr.mxu0 0.0
    %1356 = vmatpush1.msra.mxu0 0.0
    %1357 = vmatprep.subr.mxu0 0.0
    %1358 = vmatpush1.msra.mxu0 0.0
    %1359 = vmatprep.subr.mxu0 0.0
    %1360 = vmatpush1.msra.mxu0 0.0
    %1361 = vmatprep.subr.mxu0 0.0
    %1362 = vmatpush1.msra.mxu0 0.0
    %1363 = vmatprep.subr.mxu0 0.0
    %1364 = vmatpush1.msra.mxu0 0.0
    %1365 = vmatprep.subr.mxu0 0.0
    %1366 = vmatpush1.msra.mxu0 0.0
    %1367 = vmatprep.subr.mxu0 0.0
    %1368 = vmatpush1.msra.mxu0 0.0
    %1369 = vmatprep.subr.mxu0 0.0
    %1370 = vmatpush1.msra.mxu0 0.0
    %1371 = vmatprep.subr.mxu0 0.0
    %1372 = vmatpush1.msra.mxu0 0.0
    %1373 = vmatprep.subr.mxu0 0.0
    %1374 = vmatpush1.msra.mxu0 0.0
    %1375 = vmatprep.subr.mxu0 0.0
    %1376 = vmatpush1.msra.mxu0 0.0
    %1377 = vmatprep.subr.mxu0 0.0
    %1378 = vmatpush1.msra.mxu0 0.0
    %1379 = vmatprep.mubr.f32.mxu0 0.0
    %1380 = vmatmul.mubr.f32.gmra.mrb[0].mxu0 %v1313
    %v1381 = vpop.f32.mrb[0].mxu0
    %v1382 = vadd.f32 0.0, %v1381
    %v1383 = vpop.f32.mrb[0].mxu0
    %1384 = vdwg.mxu0
    %1385 = vrot.lane.b32.xlu0 %v135, 40
    %v1386 = vpop.permute.xlu0 %1385
    %v1389 = vsel %vm143, %v1308, 0
    %1391 = vmatprep.subr.mxu0 0.0
    %1392 = vmatpush1.msra.mxu0 %v1386
    %1393 = vmatprep.subr.mxu0 0.0
    %1394 = vmatpush1.msra.mxu0 0.0
    %1395 = vmatprep.subr.mxu0 0.0
    %1396 = vmatpush1.msra.mxu0 0.0
    %1397 = vmatprep.subr.mxu0 0.0
    %1398 = vmatpush1.msra.mxu0 0.0
    %1399 = vmatprep.subr.mxu0 0.0
    %1400 = vmatpush1.msra.mxu0 0.0
    %1401 = vmatprep.subr.mxu0 0.0
    %1402 = vmatpush1.msra.mxu0 0.0
    %1403 = vmatprep.subr.mxu0 0.0
    %1404 = vmatpush1.msra.mxu0 0.0
    %1405 = vmatprep.subr.mxu0 0.0
    %1406 = vmatpush1.msra.mxu0 0.0
    %1407 = vmatprep.subr.mxu0 0.0
    %1408 = vmatpush1.msra.mxu0 0.0
    %1409 = vmatprep.subr.mxu0 0.0
    %1410 = vmatpush1.msra.mxu0 0.0
    %1411 = vmatprep.subr.mxu0 0.0
    %1412 = vmatpush1.msra.mxu0 0.0
    %1413 = vmatprep.subr.mxu0 0.0
    %1414 = vmatpush1.msra.mxu0 0.0
    %1415 = vmatprep.subr.mxu0 0.0
    %1416 = vmatpush1.msra.mxu0 0.0
    %1417 = vmatprep.subr.mxu0 0.0
    %1418 = vmatpush1.msra.mxu0 0.0
    %1419 = vmatprep.subr.mxu0 0.0
    %1420 = vmatpush1.msra.mxu0 0.0
    %1421 = vmatprep.subr.mxu0 0.0
    %1422 = vmatpush1.msra.mxu0 0.0
    %1423 = vmatprep.subr.mxu0 0.0
    %1424 = vmatpush1.msra.mxu0 0.0
    %1425 = vmatprep.subr.mxu0 0.0
    %1426 = vmatpush1.msra.mxu0 0.0
    %1427 = vmatprep.subr.mxu0 0.0
    %1428 = vmatpush1.msra.mxu0 0.0
    %1429 = vmatprep.subr.mxu0 0.0
    %1430 = vmatpush1.msra.mxu0 0.0
    %1431 = vmatprep.subr.mxu0 0.0
    %1432 = vmatpush1.msra.mxu0 0.0
    %1433 = vmatprep.subr.mxu0 0.0
    %1434 = vmatpush1.msra.mxu0 0.0
    %1435 = vmatprep.subr.mxu0 0.0
    %1436 = vmatpush1.msra.mxu0 0.0
    %1437 = vmatprep.subr.mxu0 0.0
    %1438 = vmatpush1.msra.mxu0 0.0
    %1439 = vmatprep.subr.mxu0 0.0
    %1440 = vmatpush1.msra.mxu0 0.0
    %1441 = vmatprep.subr.mxu0 0.0
    %1442 = vmatpush1.msra.mxu0 0.0
    %1443 = vmatprep.subr.mxu0 0.0
    %1444 = vmatpush1.msra.mxu0 0.0
    %1445 = vmatprep.subr.mxu0 0.0
    %1446 = vmatpush1.msra.mxu0 0.0
    %1447 = vmatprep.subr.mxu0 0.0
    %1448 = vmatpush1.msra.mxu0 0.0
    %1449 = vmatprep.subr.mxu0 0.0
    %1450 = vmatpush1.msra.mxu0 0.0
    %1451 = vmatprep.subr.mxu0 0.0
    %1452 = vmatpush1.msra.mxu0 0.0
    %1453 = vmatprep.subr.mxu0 0.0
    %1454 = vmatpush1.msra.mxu0 0.0
    %1455 = vmatprep.mubr.f32.mxu0 0.0
    %1456 = vmatmul.mubr.f32.gmra.mrb[0].mxu0 %v1389
    %v1457 = vpop.f32.mrb[0].mxu0
    %v1458 = vadd.f32 0.0, %v1457
    %v1459 = vpop.f32.mrb[0].mxu0
    %1460 = vdwg.mxu0
    %1463 = vrot.lane.b32.xlu0 %v722, 8
    %v1464 = vpop.permute.xlu0 %1463
    %1465 = vrot.lane.b32.xlu0 %v798, 8
    %v1466 = vpop.permute.xlu0 %1465
    %1471 = vrot.lane.b32.xlu0 %v1052, 16
    %v1472 = vpop.permute.xlu0 %1471
    %1473 = vrot.lane.b32.xlu0 %v1128, 16
    %v1474 = vpop.permute.xlu0 %1473
    %1479 = vrot.lane.b32.xlu0 %v1382, 24
    %v1480 = vpop.permute.xlu0 %1479
    %1481 = vrot.lane.b32.xlu0 %v1458, 24
    %v1482 = vpop.permute.xlu0 %1481
    %v1485 = vsel %vm143, %v392, %v1464
    %v1486 = vsel %vm143, %v468, %v1466
    %vm1487 = vcmask 130048
    %v1488 = vsel %vm1487, %v1485, %v1472
    %v1489 = vsel %vm1487, %v1486, %v1474
    %vm1490 = vcmask 195584
    %v1491 = vsel %vm1490, %v1488, %v1480
    %v1492 = vsel %vm1490, %v1489, %v1482
    %1493 = vst.msk [vmem:[#allocation7] sm:$0xff] %vm56, %v1491
    %1494 = vst.msk [vmem:[#allocation7 + $0x8] sm:$0xff] %vm56, %v1492
    // Predicated region
    $region22: #{tpu_custom_call.1} parent=1 // pred_check
      _
    $region23: #{tpu_custom_call.1} parent=1 // pred_check_branch
      %1496 = sbr.rel (0) target = $region25
    $region24: #{tpu_custom_call.1} parent=1 // pred_region
      %s1498 = ssub.s32 256, 256
      %1499 = vsyncadd [#allocation4], %s1498
      %s1500 = sshll.u32 [#allocation7], 4
      %s1501 = int_to_ptr.vmem [resolvable:$true] %s1500
      %1506 = dma.vmem_to_hbm [thread:$0]  %s1501, 256, %s3, [#allocation4], 128, 128, 8
    $region25: #{tpu_custom_call.1} parent=1 // pred_fallthru
      _
    // Predicated region
    $region26: #{tpu_custom_call.1} parent=1 // pred_check
      _
    $region27: #{tpu_custom_call.1} parent=1 // pred_check_branch
      %1508 = sbr.rel (0) target = $region29
    $region28: #{tpu_custom_call.1} parent=1 // pred_region
      %1509 = dma.done [#allocation4], 256
    $region29: #{tpu_custom_call.1} parent=1 // pred_fallthru
      _
    %1510 = vsyncpa [#allocation3], 1
    %1511 = vsyncpa [#allocation6], 1
    %1512 = vsyncpa [#allocation4], 1

</llo_original>
